<compile_context>
chip_gen: v5e
topology: v5e:2x2
jax: 0.10.0
libtpu: 0.0.40
codegen_flags: <defaults>
</compile_context>

<pallas_src>
import jax
import jax.numpy as jnp
from jax.experimental import pallas as pl
from jax.experimental.pallas import tpu as pltpu

_EPS = 1e-8          # torch.nn.functional.cosine_similarity default eps
_LANE = 128          # TPU lane width


def _round_up(x, m):
    return ((x + m - 1) // m) * m


def _cosine_triplet_kernel(a_ref, p_ref, n_ref, out_ref, acc_ref):
    """Grid = (batch tiles, feature tiles).

    a/p/n refs: (tb, td) input slabs.
    out ref:    (tb, 2)   [col 0 = pos_dists, col 1 = neg_dists], resident
                across the feature axis (same block index for every k).
    acc ref:    (tb, 8) f32 scratch; cols 0..4 = aa, pp, nn, ap, an.
    """
    k = pl.program_id(1)

    @pl.when(k == 0)
    def _init():
        acc_ref[...] = jnp.zeros_like(acc_ref)

    f32 = jnp.float32
    a = a_ref[...].astype(f32)
    p = p_ref[...].astype(f32)
    n = n_ref[...].astype(f32)

    # Row-wise partial reductions over this feature slab (lane axis).
    acc_ref[:, 0:1] += jnp.sum(a * a, axis=-1, keepdims=True)
    acc_ref[:, 1:2] += jnp.sum(p * p, axis=-1, keepdims=True)
    acc_ref[:, 2:3] += jnp.sum(n * n, axis=-1, keepdims=True)
    acc_ref[:, 3:4] += jnp.sum(a * p, axis=-1, keepdims=True)
    acc_ref[:, 4:5] += jnp.sum(a * n, axis=-1, keepdims=True)

    @pl.when(k == pl.num_programs(1) - 1)
    def _finalize():
        # torch cosine_similarity: w12 * rsqrt(clamp_min(w1 * w2, eps^2)).
        # rsqrt runs on the EUP slot -> no VALU sqrt/divide on the hot path.
        eps2 = jnp.float32(_EPS * _EPS)
        aa = acc_ref[:, 0:1]
        pp = acc_ref[:, 1:2]
        nn = acc_ref[:, 2:3]
        ap = acc_ref[:, 3:4]
        an = acc_ref[:, 4:5]
        out_ref[:, 0:1] = -(ap * jax.lax.rsqrt(jnp.maximum(aa * pp, eps2)))
        out_ref[:, 1:2] = -(an * jax.lax.rsqrt(jnp.maximum(aa * nn, eps2)))


def _pick_tiles(batch, feat, itemsize):
    """Pick (batch_tile, feature_tile).

    The budget covers the 3 double-buffered input tiles: 20 MiB stays well
    inside the 32 MiB scoped-VMEM request on every generation (v7x: 64 MiB
    physical per TC) while being large enough that v5e/v6e stream near their
    HBM roofline (>=512..2048-row tiles).
    """
    budget = 20 * 1024 * 1024
    max_tb = 2048
    max_td = 2048

    per_row_full = 3 * 2 * feat * itemsize
    tb_full = (budget // max(per_row_full, 1)) // _LANE * _LANE

    if tb_full >= _LANE:
        # Whole feature dim fits: single reduction step per batch tile.
        tb, td = min(tb_full, max_tb), feat
    elif feat % _LANE == 0:
        # Wide, lane-aligned embedding: tile D with a *divisor* of D (a ragged
        # feature block would pollute the row sums); 512-row batch tiles keep
        # the per-grid-step overhead amortized.
        tb = 512
        lane_group_bytes = 3 * 2 * tb * itemsize * _LANE
        j_budget = max(1, min(budget // lane_group_bytes, max_td // _LANE))
        m = feat // _LANE
        td = _LANE
        for j in range(j_budget, 0, -1):
            if m % j == 0:
                td = j * _LANE
                break
    else:
        # Wide but not lane-aligned feature dim: keep td == D and shrink the
        # batch tile below 128 rows (sublane granule: 8 f32 / 16 bf16).
        sub = 8 * max(1, 4 // itemsize)
        td = feat
        tb = max(sub, (budget // per_row_full) // sub * sub)
        return min(tb, _round_up(batch, sub)), td

    # Aim for >=2 (large batches: >=4) batch-grid steps so the DMA pipeline and
    # v7x's second TensorCore both engage, without dropping below 512-row
    # tiles; and never tile past the batch itself.
    tb = min(tb, max(512, _round_up(pl.cdiv(batch, 4), _LANE)))
    tb = min(tb, _round_up(batch, _LANE))
    return tb, td


def cosine_triplet_forward(anchor, positive, negative, *,
                           block_rows=None, block_feat=None):
    """Returns (pos_dists, neg_dists), each shape (B,), float32."""
    assert anchor.shape == positive.shape == negative.shape
    assert anchor.ndim == 2
    B, D = anchor.shape
    itemsize = jnp.dtype(anchor.dtype).itemsize   # bf16 halves HBM traffic

    tb_auto, td_auto = _pick_tiles(B, D, itemsize)
    tb = tb_auto if block_rows is None else block_rows
    td = td_auto if block_feat is None else block_feat
    assert tb % 8 == 0, "batch tile must be a multiple of 8"
    assert td == D or (D % td == 0 and td % _LANE == 0), \
        "feature tile must be full D or a 128-multiple divisor of D"

    grid = (pl.cdiv(B, tb), pl.cdiv(D, td))

    # Advisory cost hint so XLA schedules neighbors around this mem-bound call.
    cost = pl.CostEstimate(
        flops=10 * B * D + 12 * B,
        transcendentals=2 * B,
        bytes_accessed=3 * B * D * itemsize + 2 * B * 4,
    )

    out = pl.pallas_call(
        _cosine_triplet_kernel,
        out_shape=jax.ShapeDtypeStruct((B, 2), jnp.float32),
        grid_spec=pltpu.PrefetchScalarGridSpec(
            num_scalar_prefetch=0,
            grid=grid,
            in_specs=[
                pl.BlockSpec((tb, td), lambda i, k: (i, k)),
                pl.BlockSpec((tb, td), lambda i, k: (i, k)),
                pl.BlockSpec((tb, td), lambda i, k: (i, k)),
            ],
            out_specs=pl.BlockSpec((tb, 2), lambda i, k: (i, 0)),
            scratch_shapes=[pltpu.VMEM((tb, 8), jnp.float32)],
        ),
        compiler_params=pltpu.CompilerParams(
            dimension_semantics=("parallel", "arbitrary"),
            vmem_limit_bytes=32 * 1024 * 1024,    # v5e default is only 16 MiB
        ),
        cost_estimate=cost,
    )(anchor, positive, negative)

    return out[:, 0], out[:, 1]


class CosineTripletObjectivePallas:
    """Cosine triplet objective; __call__ matches the torch module's output."""

    def __init__(self, margin=0.5):
        self.margin = margin

    def __call__(self, anchor_emb, positive_emb, negative_emb):
        return cosine_triplet_forward(anchor_emb, positive_emb, negative_emb)

    def loss(self, pos_dists, neg_dists):
        # Tiny epilogue over two (B,) vectors; negligible traffic, kept in JAX.
        return jnp.mean(jnp.maximum(pos_dists - neg_dists + self.margin, 0.0))


class TripletNetworkPallas:
    """Mirror of TripletNetwork: embed each input with `network`, then objective."""

    # TODO(synk): the wrapped embedding `network` is arbitrary user code in the
    # torch spec; it is kept as a plain JAX callable (identity by default).
    def __init__(self, network=None, objective=None):
        self.network = network if network is not None else (lambda x: x)
        self.objective = (objective if objective is not None
                          else CosineTripletObjectivePallas())

    def forward(self, anchor, positive, negative):
        return self.objective(self.network(anchor),
                              self.network(positive),
                              self.network(negative))

    def get_embedding(self, x):
        return self.network(x)


if __name__ == "__main__":
    key = jax.random.PRNGKey(0)
    k1, k2, k3 = jax.random.split(key, 3)
    B, D = 200, 256   # ragged batch exercises the no-pad boundary handling
    anchor = jax.random.normal(k1, (B, D), dtype=jnp.float32)
    positive = jax.random.normal(k2, (B, D), dtype=jnp.float32)
    negative = jax.random.normal(k3, (B, D), dtype=jnp.float32)

    # Pure-JAX reference (matches torch: clamp on the product of norms).
    def ref_cos(a, b):
        w12 = jnp.sum(a * b, axis=1)
        w1 = jnp.sum(a * a, axis=1)
        w2 = jnp.sum(b * b, axis=1)
        return w12 * jax.lax.rsqrt(jnp.maximum(w1 * w2, _EPS * _EPS))

    ref_pos = -ref_cos(anchor, positive)
    ref_neg = -ref_cos(anchor, negative)

    # Forced multi-tile grid: ragged batch tiles (2 x 128 rows for B=200) AND
    # a 2-step feature reduction (exercises the accumulator / finalize path).
    pos_dists, neg_dists = cosine_triplet_forward(
        anchor, positive, negative, block_rows=128, block_feat=128)
    jax.block_until_ready((pos_dists, neg_dists))
    assert pos_dists.shape == (B,) and neg_dists.shape == (B,)
    assert jnp.allclose(pos_dists, ref_pos, atol=1e-5), "pos mismatch (tiled)"
    assert jnp.allclose(neg_dists, ref_neg, atol=1e-5), "neg mismatch (tiled)"

    # Module-style path with auto tile selection (single reduction step).
    model = TripletNetworkPallas()
    pos2, neg2 = model.forward(anchor, positive, negative)
    jax.block_until_ready((pos2, neg2))
    assert jnp.allclose(pos2, ref_pos, atol=1e-5), "pos mismatch (module)"
    assert jnp.allclose(neg2, ref_neg, atol=1e-5), "neg mismatch (module)"
    _ = jax.block_until_ready(model.objective.loss(pos2, neg2))

    # bf16 input path: halves HBM traffic; accumulation stays f32 in-kernel.
    pos_bf, neg_bf = cosine_triplet_forward(anchor.astype(jnp.bfloat16),
                                            positive.astype(jnp.bfloat16),
                                            negative.astype(jnp.bfloat16))
    jax.block_until_ready((pos_bf, neg_bf))
    assert jnp.allclose(pos_bf, ref_pos, atol=5e-3), "pos mismatch (bf16)"
    assert jnp.allclose(neg_bf, ref_neg, atol=5e-3), "neg mismatch (bf16)"

    print("KERNEL_OK")
</pallas_src>

<mosaic_0001>
module attributes {stable_mosaic.version = 11 : i64} {
  func.func @_cosine_triplet_kernel(%arg0: i32, %arg1: i32, %arg2: memref<128x128xf32, #tpu.memory_space<vmem>>, %arg3: memref<128x128xf32, #tpu.memory_space<vmem>>, %arg4: memref<128x128xf32, #tpu.memory_space<vmem>>, %arg5: memref<128x2xf32, #tpu.memory_space<vmem>>, %arg6: memref<128x8xf32, #tpu.memory_space<vmem>>) attributes {dimension_semantics = [#tpu.dimension_semantics<parallel>, #tpu.dimension_semantics<arbitrary>], iteration_bounds = array<i64: 2, 2>, scalar_prefetch = 0 : i64, scratch_operands = 1 : i64, tpu.core_type = #tpu.core_type<tc>, window_params = [{transform_indices = @transform_0, window_bounds = array<i64: 128, 128>}, {transform_indices = @transform_1, window_bounds = array<i64: 128, 128>}, {transform_indices = @transform_2, window_bounds = array<i64: 128, 128>}, {transform_indices = @transform_3, window_bounds = array<i64: 128, 2>}]} {
    %c0_i32 = arith.constant 0 : i32
    %0 = arith.cmpi eq, %arg1, %c0_i32 : i32
    %1 = arith.extui %0 : i1 to i32
    %c0_i32_0 = arith.constant 0 : i32
    %2 = arith.cmpi ne, %1, %c0_i32_0 : i32
    scf.if %2 {
      %cst_27 = arith.constant 0.000000e+00 : f32
      %39 = vector.broadcast %cst_27 : f32 to vector<128x8xf32>
      %c0_28 = arith.constant 0 : index
      %c0_29 = arith.constant 0 : index
      %40 = vector.load %arg6[%c0_28, %c0_29] : memref<128x8xf32, #tpu.memory_space<vmem>>, vector<128x8xf32>
      tpu.vector_store %arg6[%c0_28, %c0_29], %39 {strides = array<i32>} : memref<128x8xf32, #tpu.memory_space<vmem>>, vector<128x8xf32>,
    } else {
    }
    %c0 = arith.constant 0 : index
    %c0_1 = arith.constant 0 : index
    %3 = vector.load %arg2[%c0, %c0_1] : memref<128x128xf32, #tpu.memory_space<vmem>>, vector<128x128xf32>
    %c0_2 = arith.constant 0 : index
    %c0_3 = arith.constant 0 : index
    %4 = vector.load %arg3[%c0_2, %c0_3] : memref<128x128xf32, #tpu.memory_space<vmem>>, vector<128x128xf32>
    %c0_4 = arith.constant 0 : index
    %c0_5 = arith.constant 0 : index
    %5 = vector.load %arg4[%c0_4, %c0_5] : memref<128x128xf32, #tpu.memory_space<vmem>>, vector<128x128xf32>
    %c0_6 = arith.constant 0 : index
    %c0_7 = arith.constant 0 : index
    %6 = vector.load %arg6[%c0_6, %c0_7] : memref<128x8xf32, #tpu.memory_space<vmem>>, vector<128x1xf32>
    %7 = arith.mulf %3, %3 : vector<128x128xf32>
    %cst = arith.constant dense<0.000000e+00> : vector<128xf32>
    %8 = vector.multi_reduction <add>, %7, %cst [1] : vector<128x128xf32> to vector<128xf32>
    %9 = vector.shape_cast %8 : vector<128xf32> to vector<128x1xf32>
    %10 = arith.addf %6, %9 : vector<128x1xf32>
    %c0_8 = arith.constant 0 : index
    %c0_9 = arith.constant 0 : index
    %11 = vector.load %arg6[%c0_8, %c0_9] : memref<128x8xf32, #tpu.memory_space<vmem>>, vector<128x1xf32>
    tpu.vector_store %arg6[%c0_8, %c0_9], %10 {strides = array<i32>} : memref<128x8xf32, #tpu.memory_space<vmem>>, vector<128x1xf32>,
    %c0_10 = arith.constant 0 : index
    %c1 = arith.constant 1 : index
    %12 = vector.load %arg6[%c0_10, %c1] : memref<128x8xf32, #tpu.memory_space<vmem>>, vector<128x1xf32>
    %13 = arith.mulf %4, %4 : vector<128x128xf32>
    %cst_11 = arith.constant dense<0.000000e+00> : vector<128xf32>
    %14 = vector.multi_reduction <add>, %13, %cst_11 [1] : vector<128x128xf32> to vector<128xf32>
    %15 = vector.shape_cast %14 : vector<128xf32> to vector<128x1xf32>
    %16 = arith.addf %12, %15 : vector<128x1xf32>
    %c0_12 = arith.constant 0 : index
    %c1_13 = arith.constant 1 : index
    %17 = vector.load %arg6[%c0_12, %c1_13] : memref<128x8xf32, #tpu.memory_space<vmem>>, vector<128x1xf32>
    tpu.vector_store %arg6[%c0_12, %c1_13], %16 {strides = array<i32>} : memref<128x8xf32, #tpu.memory_space<vmem>>, vector<128x1xf32>,
    %c0_14 = arith.constant 0 : index
    %c2 = arith.constant 2 : index
    %18 = vector.load %arg6[%c0_14, %c2] : memref<128x8xf32, #tpu.memory_space<vmem>>, vector<128x1xf32>
    %19 = arith.mulf %5, %5 : vector<128x128xf32>
    %cst_15 = arith.constant dense<0.000000e+00> : vector<128xf32>
    %20 = vector.multi_reduction <add>, %19, %cst_15 [1] : vector<128x128xf32> to vector<128xf32>
    %21 = vector.shape_cast %20 : vector<128xf32> to vector<128x1xf32>
    %22 = arith.addf %18, %21 : vector<128x1xf32>
    %c0_16 = arith.constant 0 : index
    %c2_17 = arith.constant 2 : index
    %23 = vector.load %arg6[%c0_16, %c2_17] : memref<128x8xf32, #tpu.memory_space<vmem>>, vector<128x1xf32>
    tpu.vector_store %arg6[%c0_16, %c2_17], %22 {strides = array<i32>} : memref<128x8xf32, #tpu.memory_space<vmem>>, vector<128x1xf32>,
    %c0_18 = arith.constant 0 : index
    %c3 = arith.constant 3 : index
    %24 = vector.load %arg6[%c0_18, %c3] : memref<128x8xf32, #tpu.memory_space<vmem>>, vector<128x1xf32>
    %25 = arith.mulf %3, %4 : vector<128x128xf32>
    %cst_19 = arith.constant dense<0.000000e+00> : vector<128xf32>
    %26 = vector.multi_reduction <add>, %25, %cst_19 [1] : vector<128x128xf32> to vector<128xf32>
    %27 = vector.shape_cast %26 : vector<128xf32> to vector<128x1xf32>
    %28 = arith.addf %24, %27 : vector<128x1xf32>
    %c0_20 = arith.constant 0 : index
    %c3_21 = arith.constant 3 : index
    %29 = vector.load %arg6[%c0_20, %c3_21] : memref<128x8xf32, #tpu.memory_space<vmem>>, vector<128x1xf32>
    tpu.vector_store %arg6[%c0_20, %c3_21], %28 {strides = array<i32>} : memref<128x8xf32, #tpu.memory_space<vmem>>, vector<128x1xf32>,
    %c0_22 = arith.constant 0 : index
    %c4 = arith.constant 4 : index
    %30 = vector.load %arg6[%c0_22, %c4] : memref<128x8xf32, #tpu.memory_space<vmem>>, vector<128x1xf32>
    %31 = arith.mulf %3, %5 : vector<128x128xf32>
    %cst_23 = arith.constant dense<0.000000e+00> : vector<128xf32>
    %32 = vector.multi_reduction <add>, %31, %cst_23 [1] : vector<128x128xf32> to vector<128xf32>
    %33 = vector.shape_cast %32 : vector<128xf32> to vector<128x1xf32>
    %34 = arith.addf %30, %33 : vector<128x1xf32>
    %c0_24 = arith.constant 0 : index
    %c4_25 = arith.constant 4 : index
    %35 = vector.load %arg6[%c0_24, %c4_25] : memref<128x8xf32, #tpu.memory_space<vmem>>, vector<128x1xf32>
    tpu.vector_store %arg6[%c0_24, %c4_25], %34 {strides = array<i32>} : memref<128x8xf32, #tpu.memory_space<vmem>>, vector<128x1xf32>,
    %c1_i32 = arith.constant 1 : i32
    %36 = arith.cmpi eq, %arg1, %c1_i32 : i32
    %37 = arith.extui %36 : i1 to i32
    %c0_i32_26 = arith.constant 0 : i32
    %38 = arith.cmpi ne, %37, %c0_i32_26 : i32
    scf.if %38 {
      %c0_27 = arith.constant 0 : index
      %c0_28 = arith.constant 0 : index
      %39 = vector.load %arg6[%c0_27, %c0_28] : memref<128x8xf32, #tpu.memory_space<vmem>>, vector<128x1xf32>
      %c0_29 = arith.constant 0 : index
      %c1_30 = arith.constant 1 : index
      %40 = vector.load %arg6[%c0_29, %c1_30] : memref<128x8xf32, #tpu.memory_space<vmem>>, vector<128x1xf32>
      %c0_31 = arith.constant 0 : index
      %c2_32 = arith.constant 2 : index
      %41 = vector.load %arg6[%c0_31, %c2_32] : memref<128x8xf32, #tpu.memory_space<vmem>>, vector<128x1xf32>
      %c0_33 = arith.constant 0 : index
      %c3_34 = arith.constant 3 : index
      %42 = vector.load %arg6[%c0_33, %c3_34] : memref<128x8xf32, #tpu.memory_space<vmem>>, vector<128x1xf32>
      %c0_35 = arith.constant 0 : index
      %c4_36 = arith.constant 4 : index
      %43 = vector.load %arg6[%c0_35, %c4_36] : memref<128x8xf32, #tpu.memory_space<vmem>>, vector<128x1xf32>
      %44 = arith.mulf %39, %40 : vector<128x1xf32>
      %cst_37 = arith.constant 1.000000e-16 : f32
      %45 = vector.broadcast %cst_37 : f32 to vector<128x1xf32>
      %46 = arith.maximumf %44, %45 : vector<128x1xf32>
      %47 = math.rsqrt %46 : vector<128x1xf32>
      %48 = arith.mulf %42, %47 : vector<128x1xf32>
      %cst_38 = arith.constant 0.000000e+00 : f32
      %49 = vector.broadcast %cst_38 : f32 to vector<128x1xf32>
      %50 = arith.subf %49, %48 : vector<128x1xf32>
      %c0_39 = arith.constant 0 : index
      %c0_40 = arith.constant 0 : index
      %51 = vector.load %arg5[%c0_39, %c0_40] : memref<128x2xf32, #tpu.memory_space<vmem>>, vector<128x1xf32>
      tpu.vector_store %arg5[%c0_39, %c0_40], %50 {strides = array<i32>} : memref<128x2xf32, #tpu.memory_space<vmem>>, vector<128x1xf32>,
      %52 = arith.mulf %39, %41 : vector<128x1xf32>
      %cst_41 = arith.constant 1.000000e-16 : f32
      %53 = vector.broadcast %cst_41 : f32 to vector<128x1xf32>
      %54 = arith.maximumf %52, %53 : vector<128x1xf32>
      %55 = math.rsqrt %54 : vector<128x1xf32>
      %56 = arith.mulf %43, %55 : vector<128x1xf32>
      %cst_42 = arith.constant 0.000000e+00 : f32
      %57 = vector.broadcast %cst_42 : f32 to vector<128x1xf32>
      %58 = arith.subf %57, %56 : vector<128x1xf32>
      %c0_43 = arith.constant 0 : index
      %c1_44 = arith.constant 1 : index
      %59 = vector.load %arg5[%c0_43, %c1_44] : memref<128x2xf32, #tpu.memory_space<vmem>>, vector<128x1xf32>
      tpu.vector_store %arg5[%c0_43, %c1_44], %58 {strides = array<i32>} : memref<128x2xf32, #tpu.memory_space<vmem>>, vector<128x1xf32>,
    } else {
    }
    return
  }
  func.func @transform_0(%arg0: i32, %arg1: i32) -> (i32, i32) {
    %c0_i32 = arith.constant 0 : i32
    return %arg0, %arg1 : i32, i32
  }
  func.func @transform_1(%arg0: i32, %arg1: i32) -> (i32, i32) {
    %c0_i32 = arith.constant 0 : i32
    return %arg0, %arg1 : i32, i32
  }
  func.func @transform_2(%arg0: i32, %arg1: i32) -> (i32, i32) {
    %c0_i32 = arith.constant 0 : i32
    return %arg0, %arg1 : i32, i32
  }
  func.func @transform_3(%arg0: i32, %arg1: i32) -> (i32, i32) {
    %c0_i32 = arith.constant 0 : i32
    %c0_i32_0 = arith.constant 0 : i32
    return %arg0, %c0_i32 : i32, i32
  }
}

</mosaic_0001>

<llo_original>
// kernel: tpu_custom_call.1
$region0: #{tpu_custom_call.1}
  #allocation0 [shape = 'u32[]', space=smem, size = 0x4, offset = 0x4, fixed_abs, tag = 'smem constant byte address 0x4 - core index']
  #allocation1 [shape = 'u32[72,128]{1,0:T(1,128)}', space=vmem, size = 0x9000, scoped, tag = 'internal scratch']
  #allocation2 [shape = 'f32[128,8]{1,0:T(8,128)}', space=vmem, size = 0x10000, scoped, tag = 'scratch operand']
  %s0 = inlined_call_operand.hbm [shape: f32[200,256], index: 0, kind: input, shape index: {}]
  %s1 = inlined_call_operand.hbm [shape: f32[200,256], index: 1, kind: input, shape index: {}]
  %s2 = inlined_call_operand.hbm [shape: f32[200,256], index: 2, kind: input, shape index: {}]
  %s3 = inlined_call_operand.vmem [shape: f32[200,2], index: 3, kind: output, shape index: {}]
  %s4 = sld [smem:[#allocation0]]
  $region113: #{tpu_custom_call.1} parent=0
    _
  %s6 = ssub.s32 1, %s4
  %s7 = scalar_select 0, %s6, %s4
  $region1: #{tpu_custom_call.1} parent=0
    #allocation3 [shape = 'u8[131072]{0}', space=vmem, size = 0x20000, scoped, tag = 'input window, operand 0']
    #allocation4 [shape = 's32[2]{0}', space=sflag, size = 0x8, scoped, tag = 'scoped memory for tpu_custom_call.1']
    #allocation5 [shape = 'u8[131072]{0}', space=vmem, size = 0x20000, scoped, tag = 'input window, operand 1']
    #allocation6 [shape = 's32[2]{0}', space=sflag, size = 0x8, scoped, tag = 'scoped memory for tpu_custom_call.1']
    #allocation7 [shape = 'u8[131072]{0}', space=vmem, size = 0x20000, scoped, tag = 'input window, operand 2']
    #allocation8 [shape = 'u8[131072]{0}', space=vmem, size = 0x20000, scoped, tag = 'output window, operand 0']
    %8 = vsyncpa [#allocation4], 0
    %s9 = scalar_lea.sflag [#allocation4], 1
    %10 = vsyncpa %s9, 0
    %11 = vsyncpa [#allocation6], 0
    %s12 = scalar_lea.sflag [#allocation6], 1
    %13 = vsyncpa %s12, 0
    loop: start=0, step=1, limit=6
    $region2: #{tpu_custom_call.1} parent=1 // loop_pre_header
      _
    $region3: #{tpu_custom_call.1} parent=1 // loop_header
      %s15 = sphi 0, %s19
      %p16 = scmp.ge.s32.totalorder %s15, 6
      %s22 = sphi 0, %s34
      %s23 = sphi 0, %s30
      %s24 = sphi 0, %s22
      %s25 = sphi 0, %s23
      %s26 = sphi 0, %s24
      %s27 = sphi 0, %s25
      %s39 = sphi 0, %s41
      %s42 = sphi 0, %s39
      %s43 = sphi 0, %s42
      %s59 = sphi 0, %s43
      %s67 = sphi 0, %s69
      %s70 = sphi 0, %s67
      %s71 = sphi 0, %s70
      %s87 = sphi 0, %s71
      %s95 = sphi 0, %s97
      %s98 = sphi 0, %s95
      %s99 = sphi 0, %s98
      %s115 = sphi 0, %s99
      %s121 = sphi 0, %s123
      %s124 = sphi 0, %s121
      %s125 = sphi 0, %s124
      %s141 = sphi 0, %s125
    $region4: #{tpu_custom_call.1} parent=1 // loop_header_branch
      %18 = sbr.rel (%p16) target = $region8
    $region5: #{tpu_custom_call.1} parent=1 // loop_body
      %s20 = ssub.s32 %s15, 1
      %s21 = ssub.s32 %s15, 2
      %s28 = sadd.s32 1, %s23
      %p29 = scmp.ge.s32.totalorder %s28, 2
      %s30 = scalar_select %p29, 0, %s28
      %s31 = sadd.s32 1, %s22
      %s32 = scalar_select %p29, %s31, %s22
      %p33 = scmp.ge.s32.totalorder %s32, 2
      %s34 = scalar_select %p33, 0, %s32
      %s35 = ssub.s32 %s22, %s34
      %s36 = ssub.s32 %s23, %s30
      %s37 = sor.u32 %s35, %s36
      %p38 = scmp.eq.s32.totalorder %s37, 0
      %s40 = sadd.s32 %s39, 1
      %s41 = scalar_select %p38, %s39, %s40
      %p44 = pneg %p38
      %p45 = scmp.eq.s32.totalorder %s15, 3
      %p46 = por %p44, %p45
      %p47 = scmp.ne.s32.totalorder %s39, %s42
      %p48 = scmp.eq.s32.totalorder %s15, 0
      %p49 = por %p47, %p48
      %p50 = scmp.ne.s32.totalorder %s39, %s42
      %p51 = scmp.eq.s32.totalorder %s20, 3
      %p52 = por %p50, %p51
      %p53 = scmp.ne.s32.totalorder %s42, %s43
      %p54 = scmp.eq.s32.totalorder %s20, 0
      %p55 = por %p53, %p54
      %p56 = scmp.ne.s32.totalorder %s42, %s43
      %p57 = scmp.eq.s32.totalorder %s21, 3
      %p58 = por %p56, %p57
      %p60 = scmp.ne.s32.totalorder %s43, %s59
      %p61 = scmp.eq.s32.totalorder %s21, 0
      %p62 = por %p60, %p61
      %s63 = ssub.s32 %s22, %s34
      %s64 = ssub.s32 %s23, %s30
      %s65 = sor.u32 %s63, %s64
      %p66 = scmp.eq.s32.totalorder %s65, 0
      %s68 = sadd.s32 %s67, 1
      %s69 = scalar_select %p66, %s67, %s68
      %p72 = pneg %p66
      %p73 = scmp.eq.s32.totalorder %s15, 3
      %p74 = por %p72, %p73
      %p75 = scmp.ne.s32.totalorder %s67, %s70
      %p76 = scmp.eq.s32.totalorder %s15, 0
      %p77 = por %p75, %p76
      %p78 = scmp.ne.s32.totalorder %s67, %s70
      %p79 = scmp.eq.s32.totalorder %s20, 3
      %p80 = por %p78, %p79
      %p81 = scmp.ne.s32.totalorder %s70, %s71
      %p82 = scmp.eq.s32.totalorder %s20, 0
      %p83 = por %p81, %p82
      %p84 = scmp.ne.s32.totalorder %s70, %s71
      %p85 = scmp.eq.s32.totalorder %s21, 3
      %p86 = por %p84, %p85
      %p88 = scmp.ne.s32.totalorder %s71, %s87
      %p89 = scmp.eq.s32.totalorder %s21, 0
      %p90 = por %p88, %p89
      %s91 = ssub.s32 %s22, %s34
      %s92 = ssub.s32 %s23, %s30
      %s93 = sor.u32 %s91, %s92
      %p94 = scmp.eq.s32.totalorder %s93, 0
      %s96 = sadd.s32 %s95, 1
      %s97 = scalar_select %p94, %s95, %s96
      %p100 = pneg %p94
      %p101 = scmp.eq.s32.totalorder %s15, 3
      %p102 = por %p100, %p101
      %p103 = scmp.ne.s32.totalorder %s95, %s98
      %p104 = scmp.eq.s32.totalorder %s15, 0
      %p105 = por %p103, %p104
      %p106 = scmp.ne.s32.totalorder %s95, %s98
      %p107 = scmp.eq.s32.totalorder %s20, 3
      %p108 = por %p106, %p107
      %p109 = scmp.ne.s32.totalorder %s98, %s99
      %p110 = scmp.eq.s32.totalorder %s20, 0
      %p111 = por %p109, %p110
      %p112 = scmp.ne.s32.totalorder %s98, %s99
      %p113 = scmp.eq.s32.totalorder %s21, 3
      %p114 = por %p112, %p113
      %p116 = scmp.ne.s32.totalorder %s99, %s115
      %p117 = scmp.eq.s32.totalorder %s21, 0
      %p118 = por %p116, %p117
      %s119 = ssub.s32 %s22, %s34
      %p120 = scmp.eq.s32.totalorder %s119, 0
      %s122 = sadd.s32 %s121, 1
      %s123 = scalar_select %p120, %s121, %s122
      %p126 = pneg %p120
      %p127 = scmp.eq.s32.totalorder %s15, 3
      %p128 = por %p126, %p127
      %p129 = scmp.ne.s32.totalorder %s121, %s124
      %p130 = scmp.eq.s32.totalorder %s15, 0
      %p131 = por %p129, %p130
      %p132 = scmp.ne.s32.totalorder %s121, %s124
      %p133 = scmp.eq.s32.totalorder %s20, 3
      %p134 = por %p132, %p133
      %p135 = scmp.ne.s32.totalorder %s124, %s125
      %p136 = scmp.eq.s32.totalorder %s20, 0
      %p137 = por %p135, %p136
      %p138 = scmp.ne.s32.totalorder %s124, %s125
      %p139 = scmp.eq.s32.totalorder %s21, 3
      %p140 = por %p138, %p139
      %p142 = scmp.ne.s32.totalorder %s125, %s141
      %p143 = scmp.eq.s32.totalorder %s21, 0
      %p144 = por %p142, %p143
      %p145 = scmp.le.s32.totalorder 1, %s15
      %p146 = scmp.lt.s32.totalorder %s15, 5
      %p147 = pnand %p145, %p146
      %p148 = pneg %p147
      // Predicated region
      $region9: #{tpu_custom_call.1} parent=5 // pred_check
        _
      $region10: #{tpu_custom_call.1} parent=5 // pred_check_branch
        %150 = sbr.rel (%p147) target = $region12
      $region11: #{tpu_custom_call.1} parent=5 // pred_region
        %s151 = ssub.s32 %s15, 1
      $region12: #{tpu_custom_call.1} parent=5 // pred_fallthru
        _
      %p152 = scmp.lt.s32.totalorder %s15, 4
      // Predicated region
      $region13: #{tpu_custom_call.1} parent=5 // pred_check
        %p153 = pneg %p152
      $region14: #{tpu_custom_call.1} parent=5 // pred_check_branch
        %155 = sbr.rel (%p153) target = $region16
      $region15: #{tpu_custom_call.1} parent=5 // pred_region
        // Predicated region
        $region17: #{tpu_custom_call.1} parent=15 // pred_check
          %p156 = pneg %p49
        $region18: #{tpu_custom_call.1} parent=15 // pred_check_branch
          %158 = sbr.rel (%p156) target = $region20
        $region19: #{tpu_custom_call.1} parent=15 // pred_region
          %s159 = sand.u32 %s39, 1
          %s160 = scalar_lea.sflag [#allocation4], %s159
          %s161 = sand.u32 %s39, 1
          %s162 = smul.addr %s161, 128
          %s163 = scalar_lea.vmem [#allocation3], %s162
          %s164 = smul.u32 16, %s22
          %s165 = ssub.s32 25, %s164
          %p166 = scmp.lt.s32.totalorder %s165, 16
          %s167 = scalar_select %p166, %s165, 16
          %s168 = smul.u32 8, %s167
          %s169 = ssub.s32 128, %s168
          %s170 = sshll.u32 %s169, 4
          %171 = vsyncadd %s160, %s170
          %p172 = scmp.ne.s32.totalorder 0, %s168
          %s173 = smul.addr %s164, 2
          %s174 = sadd.s32 %s23, %s173
          %s175 = smul.addr %s174, 8
          %s176 = scalar_lea.hbm %s0, %s175
          %s177 = smul.u32 8, %s167
          %s178 = sshll.u32 %s176, 4
          %s179 = int_to_ptr.hbm [resolvable:$true] %s178
          %s180 = sshll.u32 %s163, 4
          %s181 = int_to_ptr.vmem [resolvable:$true] %s180
          %s182 = sshll.u32 %s177, 4
          %186 = dma.hbm_to_vmem [thread:$0]  (%p172), %s179, %s182, %s181, %s160, 256, 128, 8
        $region20: #{tpu_custom_call.1} parent=15 // pred_fallthru
          _
        // Predicated region
        $region21: #{tpu_custom_call.1} parent=15 // pred_check
          %p187 = pneg %p77
        $region22: #{tpu_custom_call.1} parent=15 // pred_check_branch
          %189 = sbr.rel (%p187) target = $region24
        $region23: #{tpu_custom_call.1} parent=15 // pred_region
          %s190 = sand.u32 %s15, 1
          %s191 = scalar_lea.sflag [#allocation6], %s190
          %s192 = sand.u32 %s67, 1
          %s193 = smul.addr %s192, 128
          %s194 = scalar_lea.vmem [#allocation5], %s193
          %s195 = smul.u32 16, %s22
          %s196 = ssub.s32 25, %s195
          %p197 = scmp.lt.s32.totalorder %s196, 16
          %s198 = scalar_select %p197, %s196, 16
          %s199 = smul.u32 8, %s198
          %s200 = ssub.s32 128, %s199
          %s201 = sshll.u32 %s200, 4
          %202 = vsyncadd %s191, %s201
          %p203 = scmp.ne.s32.totalorder 0, %s199
          %s204 = smul.addr %s195, 2
          %s205 = sadd.s32 %s23, %s204
          %s206 = smul.addr %s205, 8
          %s207 = scalar_lea.hbm %s1, %s206
          %s208 = smul.u32 8, %s198
          %s209 = sshll.u32 %s207, 4
          %s210 = int_to_ptr.hbm [resolvable:$true] %s209
          %s211 = sshll.u32 %s194, 4
          %s212 = int_to_ptr.vmem [resolvable:$true] %s211
          %s213 = sshll.u32 %s208, 4
          %217 = dma.hbm_to_vmem [thread:$0]  (%p203), %s210, %s213, %s212, %s191, 256, 128, 8
        $region24: #{tpu_custom_call.1} parent=15 // pred_fallthru
          _
        // Predicated region
        $region25: #{tpu_custom_call.1} parent=15 // pred_check
          %p218 = pneg %p105
        $region26: #{tpu_custom_call.1} parent=15 // pred_check_branch
          %220 = sbr.rel (%p218) target = $region28
        $region27: #{tpu_custom_call.1} parent=15 // pred_region
          %s221 = sand.u32 %s15, 1
          %s222 = scalar_lea.sflag [#allocation6], %s221
          %s223 = sand.u32 %s95, 1
          %s224 = smul.addr %s223, 128
          %s225 = scalar_lea.vmem [#allocation7], %s224
          %s226 = smul.u32 16, %s22
          %s227 = ssub.s32 25, %s226
          %p228 = scmp.lt.s32.totalorder %s227, 16
          %s229 = scalar_select %p228, %s227, 16
          %s230 = smul.u32 8, %s229
          %s231 = ssub.s32 128, %s230
          %s232 = sshll.u32 %s231, 4
          %233 = vsyncadd %s222, %s232
          %p234 = scmp.ne.s32.totalorder 0, %s230
          %s235 = smul.addr %s226, 2
          %s236 = sadd.s32 %s23, %s235
          %s237 = smul.addr %s236, 8
          %s238 = scalar_lea.hbm %s2, %s237
          %s239 = smul.u32 8, %s229
          %s240 = sshll.u32 %s238, 4
          %s241 = int_to_ptr.hbm [resolvable:$true] %s240
          %s242 = sshll.u32 %s225, 4
          %s243 = int_to_ptr.vmem [resolvable:$true] %s242
          %s244 = sshll.u32 %s239, 4
          %248 = dma.hbm_to_vmem [thread:$0]  (%p234), %s241, %s244, %s243, %s222, 256, 128, 8
        $region28: #{tpu_custom_call.1} parent=15 // pred_fallthru
          _
      $region16: #{tpu_custom_call.1} parent=5 // pred_fallthru
        _
      %p249 = scmp.le.s32.totalorder 1, %s15
      %p250 = scmp.lt.s32.totalorder %s15, 5
      %p251 = pnand %p249, %p250
      %p252 = pneg %p251
      // Predicated region
      $region29: #{tpu_custom_call.1} parent=5 // pred_check
        _
      $region30: #{tpu_custom_call.1} parent=5 // pred_check_branch
        %254 = sbr.rel (%p251) target = $region32
      $region31: #{tpu_custom_call.1} parent=5 // pred_region
        %s255 = ssub.s32 %s15, 1
        %s256 = sand.u32 %s42, 1
        %s257 = scalar_lea.sflag [#allocation4], %s256
        %s258 = sand.u32 %s42, 1
        %s259 = smul.addr %s258, 128
        %s260 = scalar_lea.vmem [#allocation3], %s259
        // Predicated region
        $region33: #{tpu_custom_call.1} parent=31 // pred_check
          %p261 = pneg %p55
        $region34: #{tpu_custom_call.1} parent=31 // pred_check_branch
          %263 = sbr.rel (%p261) target = $region36
        $region35: #{tpu_custom_call.1} parent=31 // pred_region
          %265 = dma.done %s257, 2048
        $region36: #{tpu_custom_call.1} parent=31 // pred_fallthru
          _
        %s266 = sand.u32 %s20, 1
        %s267 = scalar_lea.sflag [#allocation6], %s266
        %s268 = sand.u32 %s70, 1
        %s269 = smul.addr %s268, 128
        %s270 = scalar_lea.vmem [#allocation5], %s269
        // Predicated region
        $region37: #{tpu_custom_call.1} parent=31 // pred_check
          %p271 = pneg %p83
        $region38: #{tpu_custom_call.1} parent=31 // pred_check_branch
          %273 = sbr.rel (%p271) target = $region40
        $region39: #{tpu_custom_call.1} parent=31 // pred_region
          %275 = dma.done %s267, 2048
        $region40: #{tpu_custom_call.1} parent=31 // pred_fallthru
          _
        %s276 = sand.u32 %s20, 1
        %s277 = scalar_lea.sflag [#allocation6], %s276
        %s278 = sand.u32 %s98, 1
        %s279 = smul.addr %s278, 128
        %s280 = scalar_lea.vmem [#allocation7], %s279
        // Predicated region
        $region41: #{tpu_custom_call.1} parent=31 // pred_check
          %p281 = pneg %p111
        $region42: #{tpu_custom_call.1} parent=31 // pred_check_branch
          %283 = sbr.rel (%p281) target = $region44
        $region43: #{tpu_custom_call.1} parent=31 // pred_region
          %285 = dma.done %s277, 2048
        $region44: #{tpu_custom_call.1} parent=31 // pred_fallthru
          _
        %s286 = sand.u32 %s42, 1
        %s287 = scalar_lea.sflag [#allocation4], %s286
        %s288 = sand.u32 %s42, 1
        %s289 = smul.addr %s288, 128
        %s290 = scalar_lea.vmem [#allocation3], %s289
        %p291 = pneg %p55
        %p292 = pneg %p52
        %s293 = sand.u32 %s20, 1
        %s294 = scalar_lea.sflag [#allocation6], %s293
        %s295 = sand.u32 %s70, 1
        %s296 = smul.addr %s295, 128
        %s297 = scalar_lea.vmem [#allocation5], %s296
        %p298 = pneg %p83
        %p299 = pneg %p80
        %s300 = sand.u32 %s20, 1
        %s301 = scalar_lea.sflag [#allocation6], %s300
        %s302 = sand.u32 %s98, 1
        %s303 = smul.addr %s302, 128
        %s304 = scalar_lea.vmem [#allocation7], %s303
        %p305 = pneg %p111
        %p306 = pneg %p108
        %p307 = pneg %p137
        %p308 = pneg %p134
        %s309 = sand.u32 %s124, 1
        %s310 = sand.u32 %s124, 1
        %s311 = smul.addr %s310, 128
        %s312 = scalar_lea.vmem [#allocation8], %s311
        %s313 = smul.u32 16, %s24
        %s314 = ssub.s32 25, %s313
        %p315 = scmp.lt.s32.totalorder %s314, 16
        %s316 = scalar_select %p315, %s314, 16
        %s317 = smul.u32 8, %s316
        %s318 = smul.u32 16, %s24
        %s319 = ssub.s32 25, %s318
        %p320 = scmp.lt.s32.totalorder %s319, 16
        %s321 = scalar_select %p320, %s319, 16
        %s322 = smul.u32 8, %s321
        %s323 = smul.u32 16, %s24
        %s324 = ssub.s32 25, %s323
        %p325 = scmp.lt.s32.totalorder %s324, 16
        %s326 = scalar_select %p325, %s324, 16
        %s327 = smul.u32 8, %s326
        %s328 = smul.u32 16, %s24
        %s329 = ssub.s32 25, %s328
        %p330 = scmp.lt.s32.totalorder %s329, 16
        %s331 = scalar_select %p330, %s329, 16
        %s332 = smul.u32 8, %s331
        %p333 = scmp.eq.s32.totalorder %s25, 0
        // Predicated region
        $region45: #{tpu_custom_call.1} parent=31 // pred_check
          %p334 = pneg %p333
        $region46: #{tpu_custom_call.1} parent=31 // pred_check_branch
          %336 = sbr.rel (%p334) target = $region48
        $region47: #{tpu_custom_call.1} parent=31 // pred_region
          %vm337 = vcmask 64512
          %338 = vst.msk [vmem:[#allocation2] sm:$0xff] %vm337, 0.0
          %339 = vst.msk [vmem:[#allocation2 + $0x8] sm:$0xff] %vm337, 0.0
          %340 = vst.msk [vmem:[#allocation2 + $0x10] sm:$0xff] %vm337, 0.0
          %341 = vst.msk [vmem:[#allocation2 + $0x18] sm:$0xff] %vm337, 0.0
          %342 = vst.msk [vmem:[#allocation2 + $0x20] sm:$0xff] %vm337, 0.0
          %343 = vst.msk [vmem:[#allocation2 + $0x28] sm:$0xff] %vm337, 0.0
          %344 = vst.msk [vmem:[#allocation2 + $0x30] sm:$0xff] %vm337, 0.0
          %345 = vst.msk [vmem:[#allocation2 + $0x38] sm:$0xff] %vm337, 0.0
          %346 = vst.msk [vmem:[#allocation2 + $0x40] sm:$0xff] %vm337, 0.0
          %347 = vst.msk [vmem:[#allocation2 + $0x48] sm:$0xff] %vm337, 0.0
          %348 = vst.msk [vmem:[#allocation2 + $0x50] sm:$0xff] %vm337, 0.0
          %349 = vst.msk [vmem:[#allocation2 + $0x58] sm:$0xff] %vm337, 0.0
          %350 = vst.msk [vmem:[#allocation2 + $0x60] sm:$0xff] %vm337, 0.0
          %351 = vst.msk [vmem:[#allocation2 + $0x68] sm:$0xff] %vm337, 0.0
          %352 = vst.msk [vmem:[#allocation2 + $0x70] sm:$0xff] %vm337, 0.0
          %353 = vst.msk [vmem:[#allocation2 + $0x78] sm:$0xff] %vm337, 0.0
        $region48: #{tpu_custom_call.1} parent=31 // pred_fallthru
          _
        %v354 = vld [vmem:[%s260] sm:$0xff]
        %v355 = vld [vmem:[%s260 + $0x8] sm:$0xff]
        %v356 = vld [vmem:[%s260 + $0x10] sm:$0xff]
        %v357 = vld [vmem:[%s260 + $0x18] sm:$0xff]
        %v358 = vld [vmem:[%s260 + $0x20] sm:$0xff]
        %v359 = vld [vmem:[%s260 + $0x28] sm:$0xff]
        %v360 = vld [vmem:[%s260 + $0x30] sm:$0xff]
        %v361 = vld [vmem:[%s260 + $0x38] sm:$0xff]
        %v362 = vld [vmem:[%s260 + $0x40] sm:$0xff]
        %v363 = vld [vmem:[%s260 + $0x48] sm:$0xff]
        %v364 = vld [vmem:[%s260 + $0x50] sm:$0xff]
        %v365 = vld [vmem:[%s260 + $0x58] sm:$0xff]
        %v366 = vld [vmem:[%s260 + $0x60] sm:$0xff]
        %v367 = vld [vmem:[%s260 + $0x68] sm:$0xff]
        %v368 = vld [vmem:[%s260 + $0x70] sm:$0xff]
        %v369 = vld [vmem:[%s260 + $0x78] sm:$0xff]
        %v370 = vld [vmem:[%s270] sm:$0xff]
        %v371 = vld [vmem:[%s270 + $0x8] sm:$0xff]
        %v372 = vld [vmem:[%s270 + $0x10] sm:$0xff]
        %v373 = vld [vmem:[%s270 + $0x18] sm:$0xff]
        %v374 = vld [vmem:[%s270 + $0x20] sm:$0xff]
        %v375 = vld [vmem:[%s270 + $0x28] sm:$0xff]
        %v376 = vld [vmem:[%s270 + $0x30] sm:$0xff]
        %v377 = vld [vmem:[%s270 + $0x38] sm:$0xff]
        %v378 = vld [vmem:[%s270 + $0x40] sm:$0xff]
        %v379 = vld [vmem:[%s270 + $0x48] sm:$0xff]
        %v380 = vld [vmem:[%s270 + $0x50] sm:$0xff]
        %v381 = vld [vmem:[%s270 + $0x58] sm:$0xff]
        %v382 = vld [vmem:[%s270 + $0x60] sm:$0xff]
        %v383 = vld [vmem:[%s270 + $0x68] sm:$0xff]
        %v384 = vld [vmem:[%s270 + $0x70] sm:$0xff]
        %v385 = vld [vmem:[%s270 + $0x78] sm:$0xff]
        %v386 = vld [vmem:[%s280] sm:$0xff]
        %v387 = vld [vmem:[%s280 + $0x8] sm:$0xff]
        %v388 = vld [vmem:[%s280 + $0x10] sm:$0xff]
        %v389 = vld [vmem:[%s280 + $0x18] sm:$0xff]
        %v390 = vld [vmem:[%s280 + $0x20] sm:$0xff]
        %v391 = vld [vmem:[%s280 + $0x28] sm:$0xff]
        %v392 = vld [vmem:[%s280 + $0x30] sm:$0xff]
        %v393 = vld [vmem:[%s280 + $0x38] sm:$0xff]
        %v394 = vld [vmem:[%s280 + $0x40] sm:$0xff]
        %v395 = vld [vmem:[%s280 + $0x48] sm:$0xff]
        %v396 = vld [vmem:[%s280 + $0x50] sm:$0xff]
        %v397 = vld [vmem:[%s280 + $0x58] sm:$0xff]
        %v398 = vld [vmem:[%s280 + $0x60] sm:$0xff]
        %v399 = vld [vmem:[%s280 + $0x68] sm:$0xff]
        %v400 = vld [vmem:[%s280 + $0x70] sm:$0xff]
        %v401 = vld [vmem:[%s280 + $0x78] sm:$0xff]
        %v402 = vld [vmem:[#allocation2] sm:$0xff]
        %v403 = vld [vmem:[#allocation2 + $0x8] sm:$0xff]
        %v404 = vld [vmem:[#allocation2 + $0x10] sm:$0xff]
        %v405 = vld [vmem:[#allocation2 + $0x18] sm:$0xff]
        %v406 = vld [vmem:[#allocation2 + $0x20] sm:$0xff]
        %v407 = vld [vmem:[#allocation2 + $0x28] sm:$0xff]
        %v408 = vld [vmem:[#allocation2 + $0x30] sm:$0xff]
        %v409 = vld [vmem:[#allocation2 + $0x38] sm:$0xff]
        %v410 = vld [vmem:[#allocation2 + $0x40] sm:$0xff]
        %v411 = vld [vmem:[#allocation2 + $0x48] sm:$0xff]
        %v412 = vld [vmem:[#allocation2 + $0x50] sm:$0xff]
        %v413 = vld [vmem:[#allocation2 + $0x58] sm:$0xff]
        %v414 = vld [vmem:[#allocation2 + $0x60] sm:$0xff]
        %v415 = vld [vmem:[#allocation2 + $0x68] sm:$0xff]
        %v416 = vld [vmem:[#allocation2 + $0x70] sm:$0xff]
        %v417 = vld [vmem:[#allocation2 + $0x78] sm:$0xff]
        %v418 = vmul.f32 %v354, %v354
        %v419 = vmul.f32 %v355, %v355
        %v420 = vmul.f32 %v356, %v356
        %v421 = vmul.f32 %v357, %v357
        %v422 = vmul.f32 %v358, %v358
        %v423 = vmul.f32 %v359, %v359
        %v424 = vmul.f32 %v360, %v360
        %v425 = vmul.f32 %v361, %v361
        %v426 = vmul.f32 %v362, %v362
        %v427 = vmul.f32 %v363, %v363
        %v428 = vmul.f32 %v364, %v364
        %v429 = vmul.f32 %v365, %v365
        %v430 = vmul.f32 %v366, %v366
        %v431 = vmul.f32 %v367, %v367
        %v432 = vmul.f32 %v368, %v368
        %v433 = vmul.f32 %v369, %v369
        %434 = vadd.xlane.f32.xlu0 %v418
        %v435 = vpop.xlane.xlu0 %434
        %436 = vadd.xlane.f32.xlu0 %v419
        %v437 = vpop.xlane.xlu0 %436
        %438 = vadd.xlane.f32.xlu0 %v420
        %v439 = vpop.xlane.xlu0 %438
        %440 = vadd.xlane.f32.xlu0 %v421
        %v441 = vpop.xlane.xlu0 %440
        %442 = vadd.xlane.f32.xlu0 %v422
        %v443 = vpop.xlane.xlu0 %442
        %444 = vadd.xlane.f32.xlu0 %v423
        %v445 = vpop.xlane.xlu0 %444
        %446 = vadd.xlane.f32.xlu0 %v424
        %v447 = vpop.xlane.xlu0 %446
        %448 = vadd.xlane.f32.xlu0 %v425
        %v449 = vpop.xlane.xlu0 %448
        %450 = vadd.xlane.f32.xlu0 %v426
        %v451 = vpop.xlane.xlu0 %450
        %452 = vadd.xlane.f32.xlu0 %v427
        %v453 = vpop.xlane.xlu0 %452
        %454 = vadd.xlane.f32.xlu0 %v428
        %v455 = vpop.xlane.xlu0 %454
        %456 = vadd.xlane.f32.xlu0 %v429
        %v457 = vpop.xlane.xlu0 %456
        %458 = vadd.xlane.f32.xlu0 %v430
        %v459 = vpop.xlane.xlu0 %458
        %460 = vadd.xlane.f32.xlu0 %v431
        %v461 = vpop.xlane.xlu0 %460
        %462 = vadd.xlane.f32.xlu0 %v432
        %v463 = vpop.xlane.xlu0 %462
        %464 = vadd.xlane.f32.xlu0 %v433
        %v465 = vpop.xlane.xlu0 %464
        %v466 = vadd.f32 %v402, %v435
        %v467 = vadd.f32 %v403, %v437
        %v468 = vadd.f32 %v404, %v439
        %v469 = vadd.f32 %v405, %v441
        %v470 = vadd.f32 %v406, %v443
        %v471 = vadd.f32 %v407, %v445
        %v472 = vadd.f32 %v408, %v447
        %v473 = vadd.f32 %v409, %v449
        %v474 = vadd.f32 %v410, %v451
        %v475 = vadd.f32 %v411, %v453
        %v476 = vadd.f32 %v412, %v455
        %v477 = vadd.f32 %v413, %v457
        %v478 = vadd.f32 %v414, %v459
        %v479 = vadd.f32 %v415, %v461
        %v480 = vadd.f32 %v416, %v463
        %v481 = vadd.f32 %v417, %v465
        %vm482 = vcmask 7168
        %483 = vst.msk [vmem:[#allocation2] sm:$0xff] %vm482, %v466
        %484 = vst.msk [vmem:[#allocation2 + $0x8] sm:$0xff] %vm482, %v467
        %485 = vst.msk [vmem:[#allocation2 + $0x10] sm:$0xff] %vm482, %v468
        %486 = vst.msk [vmem:[#allocation2 + $0x18] sm:$0xff] %vm482, %v469
        %487 = vst.msk [vmem:[#allocation2 + $0x20] sm:$0xff] %vm482, %v470
        %488 = vst.msk [vmem:[#allocation2 + $0x28] sm:$0xff] %vm482, %v471
        %489 = vst.msk [vmem:[#allocation2 + $0x30] sm:$0xff] %vm482, %v472
        %490 = vst.msk [vmem:[#allocation2 + $0x38] sm:$0xff] %vm482, %v473
        %491 = vst.msk [vmem:[#allocation2 + $0x40] sm:$0xff] %vm482, %v474
        %492 = vst.msk [vmem:[#allocation2 + $0x48] sm:$0xff] %vm482, %v475
        %493 = vst.msk [vmem:[#allocation2 + $0x50] sm:$0xff] %vm482, %v476
        %494 = vst.msk [vmem:[#allocation2 + $0x58] sm:$0xff] %vm482, %v477
        %495 = vst.msk [vmem:[#allocation2 + $0x60] sm:$0xff] %vm482, %v478
        %496 = vst.msk [vmem:[#allocation2 + $0x68] sm:$0xff] %vm482, %v479
        %497 = vst.msk [vmem:[#allocation2 + $0x70] sm:$0xff] %vm482, %v480
        %498 = vst.msk [vmem:[#allocation2 + $0x78] sm:$0xff] %vm482, %v481
        %v499 = vld [vmem:[#allocation2] sm:$0xff]
        %v500 = vld [vmem:[#allocation2 + $0x8] sm:$0xff]
        %v501 = vld [vmem:[#allocation2 + $0x10] sm:$0xff]
        %v502 = vld [vmem:[#allocation2 + $0x18] sm:$0xff]
        %v503 = vld [vmem:[#allocation2 + $0x20] sm:$0xff]
        %v504 = vld [vmem:[#allocation2 + $0x28] sm:$0xff]
        %v505 = vld [vmem:[#allocation2 + $0x30] sm:$0xff]
        %v506 = vld [vmem:[#allocation2 + $0x38] sm:$0xff]
        %v507 = vld [vmem:[#allocation2 + $0x40] sm:$0xff]
        %v508 = vld [vmem:[#allocation2 + $0x48] sm:$0xff]
        %v509 = vld [vmem:[#allocation2 + $0x50] sm:$0xff]
        %v510 = vld [vmem:[#allocation2 + $0x58] sm:$0xff]
        %v511 = vld [vmem:[#allocation2 + $0x60] sm:$0xff]
        %v512 = vld [vmem:[#allocation2 + $0x68] sm:$0xff]
        %v513 = vld [vmem:[#allocation2 + $0x70] sm:$0xff]
        %v514 = vld [vmem:[#allocation2 + $0x78] sm:$0xff]
        %v515 = vmul.f32 %v370, %v370
        %v516 = vmul.f32 %v371, %v371
        %v517 = vmul.f32 %v372, %v372
        %v518 = vmul.f32 %v373, %v373
        %v519 = vmul.f32 %v374, %v374
        %v520 = vmul.f32 %v375, %v375
        %v521 = vmul.f32 %v376, %v376
        %v522 = vmul.f32 %v377, %v377
        %v523 = vmul.f32 %v378, %v378
        %v524 = vmul.f32 %v379, %v379
        %v525 = vmul.f32 %v380, %v380
        %v526 = vmul.f32 %v381, %v381
        %v527 = vmul.f32 %v382, %v382
        %v528 = vmul.f32 %v383, %v383
        %v529 = vmul.f32 %v384, %v384
        %v530 = vmul.f32 %v385, %v385
        %531 = vadd.xlane.f32.xlu0 %v515
        %v532 = vpop.xlane.xlu0 %531
        %533 = vadd.xlane.f32.xlu0 %v516
        %v534 = vpop.xlane.xlu0 %533
        %535 = vadd.xlane.f32.xlu0 %v517
        %v536 = vpop.xlane.xlu0 %535
        %537 = vadd.xlane.f32.xlu0 %v518
        %v538 = vpop.xlane.xlu0 %537
        %539 = vadd.xlane.f32.xlu0 %v519
        %v540 = vpop.xlane.xlu0 %539
        %541 = vadd.xlane.f32.xlu0 %v520
        %v542 = vpop.xlane.xlu0 %541
        %543 = vadd.xlane.f32.xlu0 %v521
        %v544 = vpop.xlane.xlu0 %543
        %545 = vadd.xlane.f32.xlu0 %v522
        %v546 = vpop.xlane.xlu0 %545
        %547 = vadd.xlane.f32.xlu0 %v523
        %v548 = vpop.xlane.xlu0 %547
        %549 = vadd.xlane.f32.xlu0 %v524
        %v550 = vpop.xlane.xlu0 %549
        %551 = vadd.xlane.f32.xlu0 %v525
        %v552 = vpop.xlane.xlu0 %551
        %553 = vadd.xlane.f32.xlu0 %v526
        %v554 = vpop.xlane.xlu0 %553
        %555 = vadd.xlane.f32.xlu0 %v527
        %v556 = vpop.xlane.xlu0 %555
        %557 = vadd.xlane.f32.xlu0 %v528
        %v558 = vpop.xlane.xlu0 %557
        %559 = vadd.xlane.f32.xlu0 %v529
        %v560 = vpop.xlane.xlu0 %559
        %561 = vadd.xlane.f32.xlu0 %v530
        %v562 = vpop.xlane.xlu0 %561
        %v563 = vadd.f32 %v499, %v532
        %v564 = vadd.f32 %v500, %v534
        %v565 = vadd.f32 %v501, %v536
        %v566 = vadd.f32 %v502, %v538
        %v567 = vadd.f32 %v503, %v540
        %v568 = vadd.f32 %v504, %v542
        %v569 = vadd.f32 %v505, %v544
        %v570 = vadd.f32 %v506, %v546
        %v571 = vadd.f32 %v507, %v548
        %v572 = vadd.f32 %v508, %v550
        %v573 = vadd.f32 %v509, %v552
        %v574 = vadd.f32 %v510, %v554
        %v575 = vadd.f32 %v511, %v556
        %v576 = vadd.f32 %v512, %v558
        %v577 = vadd.f32 %v513, %v560
        %v578 = vadd.f32 %v514, %v562
        %vm579 = vcmask 15368
        %580 = vst.msk [vmem:[#allocation2] sm:$0xff] %vm579, %v563
        %581 = vst.msk [vmem:[#allocation2 + $0x8] sm:$0xff] %vm579, %v564
        %582 = vst.msk [vmem:[#allocation2 + $0x10] sm:$0xff] %vm579, %v565
        %583 = vst.msk [vmem:[#allocation2 + $0x18] sm:$0xff] %vm579, %v566
        %584 = vst.msk [vmem:[#allocation2 + $0x20] sm:$0xff] %vm579, %v567
        %585 = vst.msk [vmem:[#allocation2 + $0x28] sm:$0xff] %vm579, %v568
        %586 = vst.msk [vmem:[#allocation2 + $0x30] sm:$0xff] %vm579, %v569
        %587 = vst.msk [vmem:[#allocation2 + $0x38] sm:$0xff] %vm579, %v570
        %588 = vst.msk [vmem:[#allocation2 + $0x40] sm:$0xff] %vm579, %v571
        %589 = vst.msk [vmem:[#allocation2 + $0x48] sm:$0xff] %vm579, %v572
        %590 = vst.msk [vmem:[#allocation2 + $0x50] sm:$0xff] %vm579, %v573
        %591 = vst.msk [vmem:[#allocation2 + $0x58] sm:$0xff] %vm579, %v574
        %592 = vst.msk [vmem:[#allocation2 + $0x60] sm:$0xff] %vm579, %v575
        %593 = vst.msk [vmem:[#allocation2 + $0x68] sm:$0xff] %vm579, %v576
        %594 = vst.msk [vmem:[#allocation2 + $0x70] sm:$0xff] %vm579, %v577
        %595 = vst.msk [vmem:[#allocation2 + $0x78] sm:$0xff] %vm579, %v578
        %v596 = vld [vmem:[#allocation2] sm:$0xff]
        %v597 = vld [vmem:[#allocation2 + $0x8] sm:$0xff]
        %v598 = vld [vmem:[#allocation2 + $0x10] sm:$0xff]
        %v599 = vld [vmem:[#allocation2 + $0x18] sm:$0xff]
        %v600 = vld [vmem:[#allocation2 + $0x20] sm:$0xff]
        %v601 = vld [vmem:[#allocation2 + $0x28] sm:$0xff]
        %v602 = vld [vmem:[#allocation2 + $0x30] sm:$0xff]
        %v603 = vld [vmem:[#allocation2 + $0x38] sm:$0xff]
        %v604 = vld [vmem:[#allocation2 + $0x40] sm:$0xff]
        %v605 = vld [vmem:[#allocation2 + $0x48] sm:$0xff]
        %v606 = vld [vmem:[#allocation2 + $0x50] sm:$0xff]
        %v607 = vld [vmem:[#allocation2 + $0x58] sm:$0xff]
        %v608 = vld [vmem:[#allocation2 + $0x60] sm:$0xff]
        %v609 = vld [vmem:[#allocation2 + $0x68] sm:$0xff]
        %v610 = vld [vmem:[#allocation2 + $0x70] sm:$0xff]
        %v611 = vld [vmem:[#allocation2 + $0x78] sm:$0xff]
        %v612 = vmul.f32 %v386, %v386
        %v613 = vmul.f32 %v387, %v387
        %v614 = vmul.f32 %v388, %v388
        %v615 = vmul.f32 %v389, %v389
        %v616 = vmul.f32 %v390, %v390
        %v617 = vmul.f32 %v391, %v391
        %v618 = vmul.f32 %v392, %v392
        %v619 = vmul.f32 %v393, %v393
        %v620 = vmul.f32 %v394, %v394
        %v621 = vmul.f32 %v395, %v395
        %v622 = vmul.f32 %v396, %v396
        %v623 = vmul.f32 %v397, %v397
        %v624 = vmul.f32 %v398, %v398
        %v625 = vmul.f32 %v399, %v399
        %v626 = vmul.f32 %v400, %v400
        %v627 = vmul.f32 %v401, %v401
        %628 = vadd.xlane.f32.xlu0 %v612
        %v629 = vpop.xlane.xlu0 %628
        %630 = vadd.xlane.f32.xlu0 %v613
        %v631 = vpop.xlane.xlu0 %630
        %632 = vadd.xlane.f32.xlu0 %v614
        %v633 = vpop.xlane.xlu0 %632
        %634 = vadd.xlane.f32.xlu0 %v615
        %v635 = vpop.xlane.xlu0 %634
        %636 = vadd.xlane.f32.xlu0 %v616
        %v637 = vpop.xlane.xlu0 %636
        %638 = vadd.xlane.f32.xlu0 %v617
        %v639 = vpop.xlane.xlu0 %638
        %640 = vadd.xlane.f32.xlu0 %v618
        %v641 = vpop.xlane.xlu0 %640
        %642 = vadd.xlane.f32.xlu0 %v619
        %v643 = vpop.xlane.xlu0 %642
        %644 = vadd.xlane.f32.xlu0 %v620
        %v645 = vpop.xlane.xlu0 %644
        %646 = vadd.xlane.f32.xlu0 %v621
        %v647 = vpop.xlane.xlu0 %646
        %648 = vadd.xlane.f32.xlu0 %v622
        %v649 = vpop.xlane.xlu0 %648
        %650 = vadd.xlane.f32.xlu0 %v623
        %v651 = vpop.xlane.xlu0 %650
        %652 = vadd.xlane.f32.xlu0 %v624
        %v653 = vpop.xlane.xlu0 %652
        %654 = vadd.xlane.f32.xlu0 %v625
        %v655 = vpop.xlane.xlu0 %654
        %656 = vadd.xlane.f32.xlu0 %v626
        %v657 = vpop.xlane.xlu0 %656
        %658 = vadd.xlane.f32.xlu0 %v627
        %v659 = vpop.xlane.xlu0 %658
        %v660 = vadd.f32 %v596, %v629
        %v661 = vadd.f32 %v597, %v631
        %v662 = vadd.f32 %v598, %v633
        %v663 = vadd.f32 %v599, %v635
        %v664 = vadd.f32 %v600, %v637
        %v665 = vadd.f32 %v601, %v639
        %v666 = vadd.f32 %v602, %v641
        %v667 = vadd.f32 %v603, %v643
        %v668 = vadd.f32 %v604, %v645
        %v669 = vadd.f32 %v605, %v647
        %v670 = vadd.f32 %v606, %v649
        %v671 = vadd.f32 %v607, %v651
        %v672 = vadd.f32 %v608, %v653
        %v673 = vadd.f32 %v609, %v655
        %v674 = vadd.f32 %v610, %v657
        %v675 = vadd.f32 %v611, %v659
        %vm676 = vcmask 23568
        %677 = vst.msk [vmem:[#allocation2] sm:$0xff] %vm676, %v660
        %678 = vst.msk [vmem:[#allocation2 + $0x8] sm:$0xff] %vm676, %v661
        %679 = vst.msk [vmem:[#allocation2 + $0x10] sm:$0xff] %vm676, %v662
        %680 = vst.msk [vmem:[#allocation2 + $0x18] sm:$0xff] %vm676, %v663
        %681 = vst.msk [vmem:[#allocation2 + $0x20] sm:$0xff] %vm676, %v664
        %682 = vst.msk [vmem:[#allocation2 + $0x28] sm:$0xff] %vm676, %v665
        %683 = vst.msk [vmem:[#allocation2 + $0x30] sm:$0xff] %vm676, %v666
        %684 = vst.msk [vmem:[#allocation2 + $0x38] sm:$0xff] %vm676, %v667
        %685 = vst.msk [vmem:[#allocation2 + $0x40] sm:$0xff] %vm676, %v668
        %686 = vst.msk [vmem:[#allocation2 + $0x48] sm:$0xff] %vm676, %v669
        %687 = vst.msk [vmem:[#allocation2 + $0x50] sm:$0xff] %vm676, %v670
        %688 = vst.msk [vmem:[#allocation2 + $0x58] sm:$0xff] %vm676, %v671
        %689 = vst.msk [vmem:[#allocation2 + $0x60] sm:$0xff] %vm676, %v672
        %690 = vst.msk [vmem:[#allocation2 + $0x68] sm:$0xff] %vm676, %v673
        %691 = vst.msk [vmem:[#allocation2 + $0x70] sm:$0xff] %vm676, %v674
        %692 = vst.msk [vmem:[#allocation2 + $0x78] sm:$0xff] %vm676, %v675
        %v693 = vld [vmem:[#allocation2] sm:$0xff]
        %v694 = vld [vmem:[#allocation2 + $0x8] sm:$0xff]
        %v695 = vld [vmem:[#allocation2 + $0x10] sm:$0xff]
        %v696 = vld [vmem:[#allocation2 + $0x18] sm:$0xff]
        %v697 = vld [vmem:[#allocation2 + $0x20] sm:$0xff]
        %v698 = vld [vmem:[#allocation2 + $0x28] sm:$0xff]
        %v699 = vld [vmem:[#allocation2 + $0x30] sm:$0xff]
        %v700 = vld [vmem:[#allocation2 + $0x38] sm:$0xff]
        %v701 = vld [vmem:[#allocation2 + $0x40] sm:$0xff]
        %v702 = vld [vmem:[#allocation2 + $0x48] sm:$0xff]
        %v703 = vld [vmem:[#allocation2 + $0x50] sm:$0xff]
        %v704 = vld [vmem:[#allocation2 + $0x58] sm:$0xff]
        %v705 = vld [vmem:[#allocation2 + $0x60] sm:$0xff]
        %v706 = vld [vmem:[#allocation2 + $0x68] sm:$0xff]
        %v707 = vld [vmem:[#allocation2 + $0x70] sm:$0xff]
        %v708 = vld [vmem:[#allocation2 + $0x78] sm:$0xff]
        %v709 = vmul.f32 %v354, %v370
        %v710 = vmul.f32 %v355, %v371
        %v711 = vmul.f32 %v356, %v372
        %v712 = vmul.f32 %v357, %v373
        %v713 = vmul.f32 %v358, %v374
        %v714 = vmul.f32 %v359, %v375
        %v715 = vmul.f32 %v360, %v376
        %v716 = vmul.f32 %v361, %v377
        %v717 = vmul.f32 %v362, %v378
        %v718 = vmul.f32 %v363, %v379
        %v719 = vmul.f32 %v364, %v380
        %v720 = vmul.f32 %v365, %v381
        %v721 = vmul.f32 %v366, %v382
        %v722 = vmul.f32 %v367, %v383
        %v723 = vmul.f32 %v368, %v384
        %v724 = vmul.f32 %v369, %v385
        %725 = vadd.xlane.f32.xlu0 %v709
        %v726 = vpop.xlane.xlu0 %725
        %727 = vadd.xlane.f32.xlu0 %v710
        %v728 = vpop.xlane.xlu0 %727
        %729 = vadd.xlane.f32.xlu0 %v711
        %v730 = vpop.xlane.xlu0 %729
        %731 = vadd.xlane.f32.xlu0 %v712
        %v732 = vpop.xlane.xlu0 %731
        %733 = vadd.xlane.f32.xlu0 %v713
        %v734 = vpop.xlane.xlu0 %733
        %735 = vadd.xlane.f32.xlu0 %v714
        %v736 = vpop.xlane.xlu0 %735
        %737 = vadd.xlane.f32.xlu0 %v715
        %v738 = vpop.xlane.xlu0 %737
        %739 = vadd.xlane.f32.xlu0 %v716
        %v740 = vpop.xlane.xlu0 %739
        %741 = vadd.xlane.f32.xlu0 %v717
        %v742 = vpop.xlane.xlu0 %741
        %743 = vadd.xlane.f32.xlu0 %v718
        %v744 = vpop.xlane.xlu0 %743
        %745 = vadd.xlane.f32.xlu0 %v719
        %v746 = vpop.xlane.xlu0 %745
        %747 = vadd.xlane.f32.xlu0 %v720
        %v748 = vpop.xlane.xlu0 %747
        %749 = vadd.xlane.f32.xlu0 %v721
        %v750 = vpop.xlane.xlu0 %749
        %751 = vadd.xlane.f32.xlu0 %v722
        %v752 = vpop.xlane.xlu0 %751
        %753 = vadd.xlane.f32.xlu0 %v723
        %v754 = vpop.xlane.xlu0 %753
        %755 = vadd.xlane.f32.xlu0 %v724
        %v756 = vpop.xlane.xlu0 %755
        %v757 = vadd.f32 %v693, %v726
        %v758 = vadd.f32 %v694, %v728
        %v759 = vadd.f32 %v695, %v730
        %v760 = vadd.f32 %v696, %v732
        %v761 = vadd.f32 %v697, %v734
        %v762 = vadd.f32 %v698, %v736
        %v763 = vadd.f32 %v699, %v738
        %v764 = vadd.f32 %v700, %v740
        %v765 = vadd.f32 %v701, %v742
        %v766 = vadd.f32 %v702, %v744
        %v767 = vadd.f32 %v703, %v746
        %v768 = vadd.f32 %v704, %v748
        %v769 = vadd.f32 %v705, %v750
        %v770 = vadd.f32 %v706, %v752
        %v771 = vadd.f32 %v707, %v754
        %v772 = vadd.f32 %v708, %v756
        %vm773 = vcmask 31768
        %774 = vst.msk [vmem:[#allocation2] sm:$0xff] %vm773, %v757
        %775 = vst.msk [vmem:[#allocation2 + $0x8] sm:$0xff] %vm773, %v758
        %776 = vst.msk [vmem:[#allocation2 + $0x10] sm:$0xff] %vm773, %v759
        %777 = vst.msk [vmem:[#allocation2 + $0x18] sm:$0xff] %vm773, %v760
        %778 = vst.msk [vmem:[#allocation2 + $0x20] sm:$0xff] %vm773, %v761
        %779 = vst.msk [vmem:[#allocation2 + $0x28] sm:$0xff] %vm773, %v762
        %780 = vst.msk [vmem:[#allocation2 + $0x30] sm:$0xff] %vm773, %v763
        %781 = vst.msk [vmem:[#allocation2 + $0x38] sm:$0xff] %vm773, %v764
        %782 = vst.msk [vmem:[#allocation2 + $0x40] sm:$0xff] %vm773, %v765
        %783 = vst.msk [vmem:[#allocation2 + $0x48] sm:$0xff] %vm773, %v766
        %784 = vst.msk [vmem:[#allocation2 + $0x50] sm:$0xff] %vm773, %v767
        %785 = vst.msk [vmem:[#allocation2 + $0x58] sm:$0xff] %vm773, %v768
        %786 = vst.msk [vmem:[#allocation2 + $0x60] sm:$0xff] %vm773, %v769
        %787 = vst.msk [vmem:[#allocation2 + $0x68] sm:$0xff] %vm773, %v770
        %788 = vst.msk [vmem:[#allocation2 + $0x70] sm:$0xff] %vm773, %v771
        %789 = vst.msk [vmem:[#allocation2 + $0x78] sm:$0xff] %vm773, %v772
        %v790 = vld [vmem:[#allocation2] sm:$0xff]
        %v791 = vld [vmem:[#allocation2 + $0x8] sm:$0xff]
        %v792 = vld [vmem:[#allocation2 + $0x10] sm:$0xff]
        %v793 = vld [vmem:[#allocation2 + $0x18] sm:$0xff]
        %v794 = vld [vmem:[#allocation2 + $0x20] sm:$0xff]
        %v795 = vld [vmem:[#allocation2 + $0x28] sm:$0xff]
        %v796 = vld [vmem:[#allocation2 + $0x30] sm:$0xff]
        %v797 = vld [vmem:[#allocation2 + $0x38] sm:$0xff]
        %v798 = vld [vmem:[#allocation2 + $0x40] sm:$0xff]
        %v799 = vld [vmem:[#allocation2 + $0x48] sm:$0xff]
        %v800 = vld [vmem:[#allocation2 + $0x50] sm:$0xff]
        %v801 = vld [vmem:[#allocation2 + $0x58] sm:$0xff]
        %v802 = vld [vmem:[#allocation2 + $0x60] sm:$0xff]
        %v803 = vld [vmem:[#allocation2 + $0x68] sm:$0xff]
        %v804 = vld [vmem:[#allocation2 + $0x70] sm:$0xff]
        %v805 = vld [vmem:[#allocation2 + $0x78] sm:$0xff]
        %v806 = vmul.f32 %v354, %v386
        %v807 = vmul.f32 %v355, %v387
        %v808 = vmul.f32 %v356, %v388
        %v809 = vmul.f32 %v357, %v389
        %v810 = vmul.f32 %v358, %v390
        %v811 = vmul.f32 %v359, %v391
        %v812 = vmul.f32 %v360, %v392
        %v813 = vmul.f32 %v361, %v393
        %v814 = vmul.f32 %v362, %v394
        %v815 = vmul.f32 %v363, %v395
        %v816 = vmul.f32 %v364, %v396
        %v817 = vmul.f32 %v365, %v397
        %v818 = vmul.f32 %v366, %v398
        %v819 = vmul.f32 %v367, %v399
        %v820 = vmul.f32 %v368, %v400
        %v821 = vmul.f32 %v369, %v401
        %822 = vadd.xlane.f32.xlu0 %v806
        %v823 = vpop.xlane.xlu0 %822
        %824 = vadd.xlane.f32.xlu0 %v807
        %v825 = vpop.xlane.xlu0 %824
        %826 = vadd.xlane.f32.xlu0 %v808
        %v827 = vpop.xlane.xlu0 %826
        %828 = vadd.xlane.f32.xlu0 %v809
        %v829 = vpop.xlane.xlu0 %828
        %830 = vadd.xlane.f32.xlu0 %v810
        %v831 = vpop.xlane.xlu0 %830
        %832 = vadd.xlane.f32.xlu0 %v811
        %v833 = vpop.xlane.xlu0 %832
        %834 = vadd.xlane.f32.xlu0 %v812
        %v835 = vpop.xlane.xlu0 %834
        %836 = vadd.xlane.f32.xlu0 %v813
        %v837 = vpop.xlane.xlu0 %836
        %838 = vadd.xlane.f32.xlu0 %v814
        %v839 = vpop.xlane.xlu0 %838
        %840 = vadd.xlane.f32.xlu0 %v815
        %v841 = vpop.xlane.xlu0 %840
        %842 = vadd.xlane.f32.xlu0 %v816
        %v843 = vpop.xlane.xlu0 %842
        %844 = vadd.xlane.f32.xlu0 %v817
        %v845 = vpop.xlane.xlu0 %844
        %846 = vadd.xlane.f32.xlu0 %v818
        %v847 = vpop.xlane.xlu0 %846
        %848 = vadd.xlane.f32.xlu0 %v819
        %v849 = vpop.xlane.xlu0 %848
        %850 = vadd.xlane.f32.xlu0 %v820
        %v851 = vpop.xlane.xlu0 %850
        %852 = vadd.xlane.f32.xlu0 %v821
        %v853 = vpop.xlane.xlu0 %852
        %v854 = vadd.f32 %v790, %v823
        %v855 = vadd.f32 %v791, %v825
        %v856 = vadd.f32 %v792, %v827
        %v857 = vadd.f32 %v793, %v829
        %v858 = vadd.f32 %v794, %v831
        %v859 = vadd.f32 %v795, %v833
        %v860 = vadd.f32 %v796, %v835
        %v861 = vadd.f32 %v797, %v837
        %v862 = vadd.f32 %v798, %v839
        %v863 = vadd.f32 %v799, %v841
        %v864 = vadd.f32 %v800, %v843
        %v865 = vadd.f32 %v801, %v845
        %v866 = vadd.f32 %v802, %v847
        %v867 = vadd.f32 %v803, %v849
        %v868 = vadd.f32 %v804, %v851
        %v869 = vadd.f32 %v805, %v853
        %vm870 = vcmask 39968
        %871 = vst.msk [vmem:[#allocation2] sm:$0xff] %vm870, %v854
        %872 = vst.msk [vmem:[#allocation2 + $0x8] sm:$0xff] %vm870, %v855
        %873 = vst.msk [vmem:[#allocation2 + $0x10] sm:$0xff] %vm870, %v856
        %874 = vst.msk [vmem:[#allocation2 + $0x18] sm:$0xff] %vm870, %v857
        %875 = vst.msk [vmem:[#allocation2 + $0x20] sm:$0xff] %vm870, %v858
        %876 = vst.msk [vmem:[#allocation2 + $0x28] sm:$0xff] %vm870, %v859
        %877 = vst.msk [vmem:[#allocation2 + $0x30] sm:$0xff] %vm870, %v860
        %878 = vst.msk [vmem:[#allocation2 + $0x38] sm:$0xff] %vm870, %v861
        %879 = vst.msk [vmem:[#allocation2 + $0x40] sm:$0xff] %vm870, %v862
        %880 = vst.msk [vmem:[#allocation2 + $0x48] sm:$0xff] %vm870, %v863
        %881 = vst.msk [vmem:[#allocation2 + $0x50] sm:$0xff] %vm870, %v864
        %882 = vst.msk [vmem:[#allocation2 + $0x58] sm:$0xff] %vm870, %v865
        %883 = vst.msk [vmem:[#allocation2 + $0x60] sm:$0xff] %vm870, %v866
        %884 = vst.msk [vmem:[#allocation2 + $0x68] sm:$0xff] %vm870, %v867
        %885 = vst.msk [vmem:[#allocation2 + $0x70] sm:$0xff] %vm870, %v868
        %886 = vst.msk [vmem:[#allocation2 + $0x78] sm:$0xff] %vm870, %v869
        %p887 = scmp.eq.s32.totalorder %s25, 1
        // Predicated region
        $region49: #{tpu_custom_call.1} parent=31 // pred_check
          %p888 = pneg %p887
        $region50: #{tpu_custom_call.1} parent=31 // pred_check_branch
          %890 = sbr.rel (%p888) target = $region52
        $region51: #{tpu_custom_call.1} parent=31 // pred_region
          %v891 = vld [vmem:[#allocation2] sm:$0xff]
          %v892 = vld [vmem:[#allocation2 + $0x8] sm:$0xff]
          %v893 = vld [vmem:[#allocation2 + $0x10] sm:$0xff]
          %v894 = vld [vmem:[#allocation2 + $0x18] sm:$0xff]
          %v895 = vld [vmem:[#allocation2 + $0x20] sm:$0xff]
          %v896 = vld [vmem:[#allocation2 + $0x28] sm:$0xff]
          %v897 = vld [vmem:[#allocation2 + $0x30] sm:$0xff]
          %v898 = vld [vmem:[#allocation2 + $0x38] sm:$0xff]
          %v899 = vld [vmem:[#allocation2 + $0x40] sm:$0xff]
          %v900 = vld [vmem:[#allocation2 + $0x48] sm:$0xff]
          %v901 = vld [vmem:[#allocation2 + $0x50] sm:$0xff]
          %v902 = vld [vmem:[#allocation2 + $0x58] sm:$0xff]
          %v903 = vld [vmem:[#allocation2 + $0x60] sm:$0xff]
          %v904 = vld [vmem:[#allocation2 + $0x68] sm:$0xff]
          %v905 = vld [vmem:[#allocation2 + $0x70] sm:$0xff]
          %v906 = vld [vmem:[#allocation2 + $0x78] sm:$0xff]
          %923 = vrot.lane.b32.xlu0 %v891, 127
          %v924 = vpop.permute.xlu0 %923
          %925 = vrot.lane.b32.xlu0 %v892, 127
          %v926 = vpop.permute.xlu0 %925
          %927 = vrot.lane.b32.xlu0 %v893, 127
          %v928 = vpop.permute.xlu0 %927
          %929 = vrot.lane.b32.xlu0 %v894, 127
          %v930 = vpop.permute.xlu0 %929
          %931 = vrot.lane.b32.xlu0 %v895, 127
          %v932 = vpop.permute.xlu0 %931
          %933 = vrot.lane.b32.xlu0 %v896, 127
          %v934 = vpop.permute.xlu0 %933
          %935 = vrot.lane.b32.xlu0 %v897, 127
          %v936 = vpop.permute.xlu0 %935
          %937 = vrot.lane.b32.xlu0 %v898, 127
          %v938 = vpop.permute.xlu0 %937
          %939 = vrot.lane.b32.xlu0 %v899, 127
          %v940 = vpop.permute.xlu0 %939
          %941 = vrot.lane.b32.xlu0 %v900, 127
          %v942 = vpop.permute.xlu0 %941
          %943 = vrot.lane.b32.xlu0 %v901, 127
          %v944 = vpop.permute.xlu0 %943
          %945 = vrot.lane.b32.xlu0 %v902, 127
          %v946 = vpop.permute.xlu0 %945
          %947 = vrot.lane.b32.xlu0 %v903, 127
          %v948 = vpop.permute.xlu0 %947
          %949 = vrot.lane.b32.xlu0 %v904, 127
          %v950 = vpop.permute.xlu0 %949
          %951 = vrot.lane.b32.xlu0 %v905, 127
          %v952 = vpop.permute.xlu0 %951
          %953 = vrot.lane.b32.xlu0 %v906, 127
          %v954 = vpop.permute.xlu0 %953
          %v971 = vmul.f32 %v891, %v924
          %v972 = vmul.f32 %v892, %v926
          %v973 = vmul.f32 %v893, %v928
          %v974 = vmul.f32 %v894, %v930
          %v975 = vmul.f32 %v895, %v932
          %v976 = vmul.f32 %v896, %v934
          %v977 = vmul.f32 %v897, %v936
          %v978 = vmul.f32 %v898, %v938
          %v979 = vmul.f32 %v899, %v940
          %v980 = vmul.f32 %v900, %v942
          %v981 = vmul.f32 %v901, %v944
          %v982 = vmul.f32 %v902, %v946
          %v983 = vmul.f32 %v903, %v948
          %v984 = vmul.f32 %v904, %v950
          %v985 = vmul.f32 %v905, %v952
          %v986 = vmul.f32 %v906, %v954
          %v987 = vmax.f32 %v971, 1e-16
          %v988 = vmax.f32 %v972, 1e-16
          %v989 = vmax.f32 %v973, 1e-16
          %v990 = vmax.f32 %v974, 1e-16
          %v991 = vmax.f32 %v975, 1e-16
          %v992 = vmax.f32 %v976, 1e-16
          %v993 = vmax.f32 %v977, 1e-16
          %v994 = vmax.f32 %v978, 1e-16
          %v995 = vmax.f32 %v979, 1e-16
          %v996 = vmax.f32 %v980, 1e-16
          %v997 = vmax.f32 %v981, 1e-16
          %v998 = vmax.f32 %v982, 1e-16
          %v999 = vmax.f32 %v983, 1e-16
          %v1000 = vmax.f32 %v984, 1e-16
          %v1001 = vmax.f32 %v985, 1e-16
          %v1002 = vmax.f32 %v986, 1e-16
          %v1003 = vrsqrt.pop %v987
          %v1004 = vmul.f32 %v1003, %v987
          %v1005 = vmul.f32 %v1004, %v1003
          %v1006 = vmul.f32 0.5, %v1005
          %v1007 = vsub.f32 1.5, %v1006
          %v1008 = vmul.f32 %v1003, %v1007
          %vm1009 = vweird.f32 %v987
          %vm1010 = vweird.f32 %v1003
          %vm1011 = vmor %vm1009, %vm1010
          %v1012 = vsel %vm1011, %v1003, %v1008
          %v1013 = vrsqrt.pop %v988
          %v1014 = vmul.f32 %v1013, %v988
          %v1015 = vmul.f32 %v1014, %v1013
          %v1016 = vmul.f32 0.5, %v1015
          %v1017 = vsub.f32 1.5, %v1016
          %v1018 = vmul.f32 %v1013, %v1017
          %vm1019 = vweird.f32 %v988
          %vm1020 = vweird.f32 %v1013
          %vm1021 = vmor %vm1019, %vm1020
          %v1022 = vsel %vm1021, %v1013, %v1018
          %v1023 = vrsqrt.pop %v989
          %v1024 = vmul.f32 %v1023, %v989
          %v1025 = vmul.f32 %v1024, %v1023
          %v1026 = vmul.f32 0.5, %v1025
          %v1027 = vsub.f32 1.5, %v1026
          %v1028 = vmul.f32 %v1023, %v1027
          %vm1029 = vweird.f32 %v989
          %vm1030 = vweird.f32 %v1023
          %vm1031 = vmor %vm1029, %vm1030
          %v1032 = vsel %vm1031, %v1023, %v1028
          %v1033 = vrsqrt.pop %v990
          %v1034 = vmul.f32 %v1033, %v990
          %v1035 = vmul.f32 %v1034, %v1033
          %v1036 = vmul.f32 0.5, %v1035
          %v1037 = vsub.f32 1.5, %v1036
          %v1038 = vmul.f32 %v1033, %v1037
          %vm1039 = vweird.f32 %v990
          %vm1040 = vweird.f32 %v1033
          %vm1041 = vmor %vm1039, %vm1040
          %v1042 = vsel %vm1041, %v1033, %v1038
          %v1043 = vrsqrt.pop %v991
          %v1044 = vmul.f32 %v1043, %v991
          %v1045 = vmul.f32 %v1044, %v1043
          %v1046 = vmul.f32 0.5, %v1045
          %v1047 = vsub.f32 1.5, %v1046
          %v1048 = vmul.f32 %v1043, %v1047
          %vm1049 = vweird.f32 %v991
          %vm1050 = vweird.f32 %v1043
          %vm1051 = vmor %vm1049, %vm1050
          %v1052 = vsel %vm1051, %v1043, %v1048
          %v1053 = vrsqrt.pop %v992
          %v1054 = vmul.f32 %v1053, %v992
          %v1055 = vmul.f32 %v1054, %v1053
          %v1056 = vmul.f32 0.5, %v1055
          %v1057 = vsub.f32 1.5, %v1056
          %v1058 = vmul.f32 %v1053, %v1057
          %vm1059 = vweird.f32 %v992
          %vm1060 = vweird.f32 %v1053
          %vm1061 = vmor %vm1059, %vm1060
          %v1062 = vsel %vm1061, %v1053, %v1058
          %v1063 = vrsqrt.pop %v993
          %v1064 = vmul.f32 %v1063, %v993
          %v1065 = vmul.f32 %v1064, %v1063
          %v1066 = vmul.f32 0.5, %v1065
          %v1067 = vsub.f32 1.5, %v1066
          %v1068 = vmul.f32 %v1063, %v1067
          %vm1069 = vweird.f32 %v993
          %vm1070 = vweird.f32 %v1063
          %vm1071 = vmor %vm1069, %vm1070
          %v1072 = vsel %vm1071, %v1063, %v1068
          %v1073 = vrsqrt.pop %v994
          %v1074 = vmul.f32 %v1073, %v994
          %v1075 = vmul.f32 %v1074, %v1073
          %v1076 = vmul.f32 0.5, %v1075
          %v1077 = vsub.f32 1.5, %v1076
          %v1078 = vmul.f32 %v1073, %v1077
          %vm1079 = vweird.f32 %v994
          %vm1080 = vweird.f32 %v1073
          %vm1081 = vmor %vm1079, %vm1080
          %v1082 = vsel %vm1081, %v1073, %v1078
          %v1083 = vrsqrt.pop %v995
          %v1084 = vmul.f32 %v1083, %v995
          %v1085 = vmul.f32 %v1084, %v1083
          %v1086 = vmul.f32 0.5, %v1085
          %v1087 = vsub.f32 1.5, %v1086
          %v1088 = vmul.f32 %v1083, %v1087
          %vm1089 = vweird.f32 %v995
          %vm1090 = vweird.f32 %v1083
          %vm1091 = vmor %vm1089, %vm1090
          %v1092 = vsel %vm1091, %v1083, %v1088
          %v1093 = vrsqrt.pop %v996
          %v1094 = vmul.f32 %v1093, %v996
          %v1095 = vmul.f32 %v1094, %v1093
          %v1096 = vmul.f32 0.5, %v1095
          %v1097 = vsub.f32 1.5, %v1096
          %v1098 = vmul.f32 %v1093, %v1097
          %vm1099 = vweird.f32 %v996
          %vm1100 = vweird.f32 %v1093
          %vm1101 = vmor %vm1099, %vm1100
          %v1102 = vsel %vm1101, %v1093, %v1098
          %v1103 = vrsqrt.pop %v997
          %v1104 = vmul.f32 %v1103, %v997
          %v1105 = vmul.f32 %v1104, %v1103
          %v1106 = vmul.f32 0.5, %v1105
          %v1107 = vsub.f32 1.5, %v1106
          %v1108 = vmul.f32 %v1103, %v1107
          %vm1109 = vweird.f32 %v997
          %vm1110 = vweird.f32 %v1103
          %vm1111 = vmor %vm1109, %vm1110
          %v1112 = vsel %vm1111, %v1103, %v1108
          %v1113 = vrsqrt.pop %v998
          %v1114 = vmul.f32 %v1113, %v998
          %v1115 = vmul.f32 %v1114, %v1113
          %v1116 = vmul.f32 0.5, %v1115
          %v1117 = vsub.f32 1.5, %v1116
          %v1118 = vmul.f32 %v1113, %v1117
          %vm1119 = vweird.f32 %v998
          %vm1120 = vweird.f32 %v1113
          %vm1121 = vmor %vm1119, %vm1120
          %v1122 = vsel %vm1121, %v1113, %v1118
          %v1123 = vrsqrt.pop %v999
          %v1124 = vmul.f32 %v1123, %v999
          %v1125 = vmul.f32 %v1124, %v1123
          %v1126 = vmul.f32 0.5, %v1125
          %v1127 = vsub.f32 1.5, %v1126
          %v1128 = vmul.f32 %v1123, %v1127
          %vm1129 = vweird.f32 %v999
          %vm1130 = vweird.f32 %v1123
          %vm1131 = vmor %vm1129, %vm1130
          %v1132 = vsel %vm1131, %v1123, %v1128
          %v1133 = vrsqrt.pop %v1000
          %v1134 = vmul.f32 %v1133, %v1000
          %v1135 = vmul.f32 %v1134, %v1133
          %v1136 = vmul.f32 0.5, %v1135
          %v1137 = vsub.f32 1.5, %v1136
          %v1138 = vmul.f32 %v1133, %v1137
          %vm1139 = vweird.f32 %v1000
          %vm1140 = vweird.f32 %v1133
          %vm1141 = vmor %vm1139, %vm1140
          %v1142 = vsel %vm1141, %v1133, %v1138
          %v1143 = vrsqrt.pop %v1001
          %v1144 = vmul.f32 %v1143, %v1001
          %v1145 = vmul.f32 %v1144, %v1143
          %v1146 = vmul.f32 0.5, %v1145
          %v1147 = vsub.f32 1.5, %v1146
          %v1148 = vmul.f32 %v1143, %v1147
          %vm1149 = vweird.f32 %v1001
          %vm1150 = vweird.f32 %v1143
          %vm1151 = vmor %vm1149, %vm1150
          %v1152 = vsel %vm1151, %v1143, %v1148
          %v1153 = vrsqrt.pop %v1002
          %v1154 = vmul.f32 %v1153, %v1002
          %v1155 = vmul.f32 %v1154, %v1153
          %v1156 = vmul.f32 0.5, %v1155
          %v1157 = vsub.f32 1.5, %v1156
          %v1158 = vmul.f32 %v1153, %v1157
          %vm1159 = vweird.f32 %v1002
          %vm1160 = vweird.f32 %v1153
          %vm1161 = vmor %vm1159, %vm1160
          %v1162 = vsel %vm1161, %v1153, %v1158
          %1179 = vrot.lane.b32.xlu0 %v1012, 3
          %v1180 = vpop.permute.xlu0 %1179
          %1181 = vrot.lane.b32.xlu0 %v1022, 3
          %v1182 = vpop.permute.xlu0 %1181
          %1183 = vrot.lane.b32.xlu0 %v1032, 3
          %v1184 = vpop.permute.xlu0 %1183
          %1185 = vrot.lane.b32.xlu0 %v1042, 3
          %v1186 = vpop.permute.xlu0 %1185
          %1187 = vrot.lane.b32.xlu0 %v1052, 3
          %v1188 = vpop.permute.xlu0 %1187
          %1189 = vrot.lane.b32.xlu0 %v1062, 3
          %v1190 = vpop.permute.xlu0 %1189
          %1191 = vrot.lane.b32.xlu0 %v1072, 3
          %v1192 = vpop.permute.xlu0 %1191
          %1193 = vrot.lane.b32.xlu0 %v1082, 3
          %v1194 = vpop.permute.xlu0 %1193
          %1195 = vrot.lane.b32.xlu0 %v1092, 3
          %v1196 = vpop.permute.xlu0 %1195
          %1197 = vrot.lane.b32.xlu0 %v1102, 3
          %v1198 = vpop.permute.xlu0 %1197
          %1199 = vrot.lane.b32.xlu0 %v1112, 3
          %v1200 = vpop.permute.xlu0 %1199
          %1201 = vrot.lane.b32.xlu0 %v1122, 3
          %v1202 = vpop.permute.xlu0 %1201
          %1203 = vrot.lane.b32.xlu0 %v1132, 3
          %v1204 = vpop.permute.xlu0 %1203
          %1205 = vrot.lane.b32.xlu0 %v1142, 3
          %v1206 = vpop.permute.xlu0 %1205
          %1207 = vrot.lane.b32.xlu0 %v1152, 3
          %v1208 = vpop.permute.xlu0 %1207
          %1209 = vrot.lane.b32.xlu0 %v1162, 3
          %v1210 = vpop.permute.xlu0 %1209
          %v1227 = vmul.f32 %v891, %v1180
          %v1228 = vmul.f32 %v892, %v1182
          %v1229 = vmul.f32 %v893, %v1184
          %v1230 = vmul.f32 %v894, %v1186
          %v1231 = vmul.f32 %v895, %v1188
          %v1232 = vmul.f32 %v896, %v1190
          %v1233 = vmul.f32 %v897, %v1192
          %v1234 = vmul.f32 %v898, %v1194
          %v1235 = vmul.f32 %v899, %v1196
          %v1236 = vmul.f32 %v900, %v1198
          %v1237 = vmul.f32 %v901, %v1200
          %v1238 = vmul.f32 %v902, %v1202
          %v1239 = vmul.f32 %v903, %v1204
          %v1240 = vmul.f32 %v904, %v1206
          %v1241 = vmul.f32 %v905, %v1208
          %v1242 = vmul.f32 %v906, %v1210
          %v1243 = vsub.f32 0.0, %v1227
          %v1244 = vsub.f32 0.0, %v1228
          %v1245 = vsub.f32 0.0, %v1229
          %v1246 = vsub.f32 0.0, %v1230
          %v1247 = vsub.f32 0.0, %v1231
          %v1248 = vsub.f32 0.0, %v1232
          %v1249 = vsub.f32 0.0, %v1233
          %v1250 = vsub.f32 0.0, %v1234
          %v1251 = vsub.f32 0.0, %v1235
          %v1252 = vsub.f32 0.0, %v1236
          %v1253 = vsub.f32 0.0, %v1237
          %v1254 = vsub.f32 0.0, %v1238
          %v1255 = vsub.f32 0.0, %v1239
          %v1256 = vsub.f32 0.0, %v1240
          %v1257 = vsub.f32 0.0, %v1241
          %v1258 = vsub.f32 0.0, %v1242
          %1275 = vrot.lane.b32.xlu0 %v1243, 125
          %v1276 = vpop.permute.xlu0 %1275
          %1277 = vrot.lane.b32.xlu0 %v1244, 125
          %v1278 = vpop.permute.xlu0 %1277
          %1279 = vrot.lane.b32.xlu0 %v1245, 125
          %v1280 = vpop.permute.xlu0 %1279
          %1281 = vrot.lane.b32.xlu0 %v1246, 125
          %v1282 = vpop.permute.xlu0 %1281
          %1283 = vrot.lane.b32.xlu0 %v1247, 125
          %v1284 = vpop.permute.xlu0 %1283
          %1285 = vrot.lane.b32.xlu0 %v1248, 125
          %v1286 = vpop.permute.xlu0 %1285
          %1287 = vrot.lane.b32.xlu0 %v1249, 125
          %v1288 = vpop.permute.xlu0 %1287
          %1289 = vrot.lane.b32.xlu0 %v1250, 125
          %v1290 = vpop.permute.xlu0 %1289
          %1291 = vrot.lane.b32.xlu0 %v1251, 125
          %v1292 = vpop.permute.xlu0 %1291
          %1293 = vrot.lane.b32.xlu0 %v1252, 125
          %v1294 = vpop.permute.xlu0 %1293
          %1295 = vrot.lane.b32.xlu0 %v1253, 125
          %v1296 = vpop.permute.xlu0 %1295
          %1297 = vrot.lane.b32.xlu0 %v1254, 125
          %v1298 = vpop.permute.xlu0 %1297
          %1299 = vrot.lane.b32.xlu0 %v1255, 125
          %v1300 = vpop.permute.xlu0 %1299
          %1301 = vrot.lane.b32.xlu0 %v1256, 125
          %v1302 = vpop.permute.xlu0 %1301
          %1303 = vrot.lane.b32.xlu0 %v1257, 125
          %v1304 = vpop.permute.xlu0 %1303
          %1305 = vrot.lane.b32.xlu0 %v1258, 125
          %v1306 = vpop.permute.xlu0 %1305
          %1323 = vst.msk [vmem:[%s312] sm:$0xff] %vm482, %v1276
          %1324 = vst.msk [vmem:[%s312 + $0x8] sm:$0xff] %vm482, %v1278
          %1325 = vst.msk [vmem:[%s312 + $0x10] sm:$0xff] %vm482, %v1280
          %1326 = vst.msk [vmem:[%s312 + $0x18] sm:$0xff] %vm482, %v1282
          %1327 = vst.msk [vmem:[%s312 + $0x20] sm:$0xff] %vm482, %v1284
          %1328 = vst.msk [vmem:[%s312 + $0x28] sm:$0xff] %vm482, %v1286
          %1329 = vst.msk [vmem:[%s312 + $0x30] sm:$0xff] %vm482, %v1288
          %1330 = vst.msk [vmem:[%s312 + $0x38] sm:$0xff] %vm482, %v1290
          %1331 = vst.msk [vmem:[%s312 + $0x40] sm:$0xff] %vm482, %v1292
          %1332 = vst.msk [vmem:[%s312 + $0x48] sm:$0xff] %vm482, %v1294
          %1333 = vst.msk [vmem:[%s312 + $0x50] sm:$0xff] %vm482, %v1296
          %1334 = vst.msk [vmem:[%s312 + $0x58] sm:$0xff] %vm482, %v1298
          %1335 = vst.msk [vmem:[%s312 + $0x60] sm:$0xff] %vm482, %v1300
          %1336 = vst.msk [vmem:[%s312 + $0x68] sm:$0xff] %vm482, %v1302
          %1337 = vst.msk [vmem:[%s312 + $0x70] sm:$0xff] %vm482, %v1304
          %1338 = vst.msk [vmem:[%s312 + $0x78] sm:$0xff] %vm482, %v1306
          %1339 = vrot.lane.b32.xlu0 %v891, 126
          %v1340 = vpop.permute.xlu0 %1339
          %1341 = vrot.lane.b32.xlu0 %v892, 126
          %v1342 = vpop.permute.xlu0 %1341
          %1343 = vrot.lane.b32.xlu0 %v893, 126
          %v1344 = vpop.permute.xlu0 %1343
          %1345 = vrot.lane.b32.xlu0 %v894, 126
          %v1346 = vpop.permute.xlu0 %1345
          %1347 = vrot.lane.b32.xlu0 %v895, 126
          %v1348 = vpop.permute.xlu0 %1347
          %1349 = vrot.lane.b32.xlu0 %v896, 126
          %v1350 = vpop.permute.xlu0 %1349
          %1351 = vrot.lane.b32.xlu0 %v897, 126
          %v1352 = vpop.permute.xlu0 %1351
          %1353 = vrot.lane.b32.xlu0 %v898, 126
          %v1354 = vpop.permute.xlu0 %1353
          %1355 = vrot.lane.b32.xlu0 %v899, 126
          %v1356 = vpop.permute.xlu0 %1355
          %1357 = vrot.lane.b32.xlu0 %v900, 126
          %v1358 = vpop.permute.xlu0 %1357
          %1359 = vrot.lane.b32.xlu0 %v901, 126
          %v1360 = vpop.permute.xlu0 %1359
          %1361 = vrot.lane.b32.xlu0 %v902, 126
          %v1362 = vpop.permute.xlu0 %1361
          %1363 = vrot.lane.b32.xlu0 %v903, 126
          %v1364 = vpop.permute.xlu0 %1363
          %1365 = vrot.lane.b32.xlu0 %v904, 126
          %v1366 = vpop.permute.xlu0 %1365
          %1367 = vrot.lane.b32.xlu0 %v905, 126
          %v1368 = vpop.permute.xlu0 %1367
          %1369 = vrot.lane.b32.xlu0 %v906, 126
          %v1370 = vpop.permute.xlu0 %1369
          %v1387 = vmul.f32 %v891, %v1340
          %v1388 = vmul.f32 %v892, %v1342
          %v1389 = vmul.f32 %v893, %v1344
          %v1390 = vmul.f32 %v894, %v1346
          %v1391 = vmul.f32 %v895, %v1348
          %v1392 = vmul.f32 %v896, %v1350
          %v1393 = vmul.f32 %v897, %v1352
          %v1394 = vmul.f32 %v898, %v1354
          %v1395 = vmul.f32 %v899, %v1356
          %v1396 = vmul.f32 %v900, %v1358
          %v1397 = vmul.f32 %v901, %v1360
          %v1398 = vmul.f32 %v902, %v1362
          %v1399 = vmul.f32 %v903, %v1364
          %v1400 = vmul.f32 %v904, %v1366
          %v1401 = vmul.f32 %v905, %v1368
          %v1402 = vmul.f32 %v906, %v1370
          %v1403 = vmax.f32 %v1387, 1e-16
          %v1404 = vmax.f32 %v1388, 1e-16
          %v1405 = vmax.f32 %v1389, 1e-16
          %v1406 = vmax.f32 %v1390, 1e-16
          %v1407 = vmax.f32 %v1391, 1e-16
          %v1408 = vmax.f32 %v1392, 1e-16
          %v1409 = vmax.f32 %v1393, 1e-16
          %v1410 = vmax.f32 %v1394, 1e-16
          %v1411 = vmax.f32 %v1395, 1e-16
          %v1412 = vmax.f32 %v1396, 1e-16
          %v1413 = vmax.f32 %v1397, 1e-16
          %v1414 = vmax.f32 %v1398, 1e-16
          %v1415 = vmax.f32 %v1399, 1e-16
          %v1416 = vmax.f32 %v1400, 1e-16
          %v1417 = vmax.f32 %v1401, 1e-16
          %v1418 = vmax.f32 %v1402, 1e-16
          %v1419 = vrsqrt.pop %v1403
          %v1420 = vmul.f32 %v1419, %v1403
          %v1421 = vmul.f32 %v1420, %v1419
          %v1422 = vmul.f32 0.5, %v1421
          %v1423 = vsub.f32 1.5, %v1422
          %v1424 = vmul.f32 %v1419, %v1423
          %vm1425 = vweird.f32 %v1403
          %vm1426 = vweird.f32 %v1419
          %vm1427 = vmor %vm1425, %vm1426
          %v1428 = vsel %vm1427, %v1419, %v1424
          %v1429 = vrsqrt.pop %v1404
          %v1430 = vmul.f32 %v1429, %v1404
          %v1431 = vmul.f32 %v1430, %v1429
          %v1432 = vmul.f32 0.5, %v1431
          %v1433 = vsub.f32 1.5, %v1432
          %v1434 = vmul.f32 %v1429, %v1433
          %vm1435 = vweird.f32 %v1404
          %vm1436 = vweird.f32 %v1429
          %vm1437 = vmor %vm1435, %vm1436
          %v1438 = vsel %vm1437, %v1429, %v1434
          %v1439 = vrsqrt.pop %v1405
          %v1440 = vmul.f32 %v1439, %v1405
          %v1441 = vmul.f32 %v1440, %v1439
          %v1442 = vmul.f32 0.5, %v1441
          %v1443 = vsub.f32 1.5, %v1442
          %v1444 = vmul.f32 %v1439, %v1443
          %vm1445 = vweird.f32 %v1405
          %vm1446 = vweird.f32 %v1439
          %vm1447 = vmor %vm1445, %vm1446
          %v1448 = vsel %vm1447, %v1439, %v1444
          %v1449 = vrsqrt.pop %v1406
          %v1450 = vmul.f32 %v1449, %v1406
          %v1451 = vmul.f32 %v1450, %v1449
          %v1452 = vmul.f32 0.5, %v1451
          %v1453 = vsub.f32 1.5, %v1452
          %v1454 = vmul.f32 %v1449, %v1453
          %vm1455 = vweird.f32 %v1406
          %vm1456 = vweird.f32 %v1449
          %vm1457 = vmor %vm1455, %vm1456
          %v1458 = vsel %vm1457, %v1449, %v1454
          %v1459 = vrsqrt.pop %v1407
          %v1460 = vmul.f32 %v1459, %v1407
          %v1461 = vmul.f32 %v1460, %v1459
          %v1462 = vmul.f32 0.5, %v1461
          %v1463 = vsub.f32 1.5, %v1462
          %v1464 = vmul.f32 %v1459, %v1463
          %vm1465 = vweird.f32 %v1407
          %vm1466 = vweird.f32 %v1459
          %vm1467 = vmor %vm1465, %vm1466
          %v1468 = vsel %vm1467, %v1459, %v1464
          %v1469 = vrsqrt.pop %v1408
          %v1470 = vmul.f32 %v1469, %v1408
          %v1471 = vmul.f32 %v1470, %v1469
          %v1472 = vmul.f32 0.5, %v1471
          %v1473 = vsub.f32 1.5, %v1472
          %v1474 = vmul.f32 %v1469, %v1473
          %vm1475 = vweird.f32 %v1408
          %vm1476 = vweird.f32 %v1469
          %vm1477 = vmor %vm1475, %vm1476
          %v1478 = vsel %vm1477, %v1469, %v1474
          %v1479 = vrsqrt.pop %v1409
          %v1480 = vmul.f32 %v1479, %v1409
          %v1481 = vmul.f32 %v1480, %v1479
          %v1482 = vmul.f32 0.5, %v1481
          %v1483 = vsub.f32 1.5, %v1482
          %v1484 = vmul.f32 %v1479, %v1483
          %vm1485 = vweird.f32 %v1409
          %vm1486 = vweird.f32 %v1479
          %vm1487 = vmor %vm1485, %vm1486
          %v1488 = vsel %vm1487, %v1479, %v1484
          %v1489 = vrsqrt.pop %v1410
          %v1490 = vmul.f32 %v1489, %v1410
          %v1491 = vmul.f32 %v1490, %v1489
          %v1492 = vmul.f32 0.5, %v1491
          %v1493 = vsub.f32 1.5, %v1492
          %v1494 = vmul.f32 %v1489, %v1493
          %vm1495 = vweird.f32 %v1410
          %vm1496 = vweird.f32 %v1489
          %vm1497 = vmor %vm1495, %vm1496
          %v1498 = vsel %vm1497, %v1489, %v1494
          %v1499 = vrsqrt.pop %v1411
          %v1500 = vmul.f32 %v1499, %v1411
          %v1501 = vmul.f32 %v1500, %v1499
          %v1502 = vmul.f32 0.5, %v1501
          %v1503 = vsub.f32 1.5, %v1502
          %v1504 = vmul.f32 %v1499, %v1503
          %vm1505 = vweird.f32 %v1411
          %vm1506 = vweird.f32 %v1499
          %vm1507 = vmor %vm1505, %vm1506
          %v1508 = vsel %vm1507, %v1499, %v1504
          %v1509 = vrsqrt.pop %v1412
          %v1510 = vmul.f32 %v1509, %v1412
          %v1511 = vmul.f32 %v1510, %v1509
          %v1512 = vmul.f32 0.5, %v1511
          %v1513 = vsub.f32 1.5, %v1512
          %v1514 = vmul.f32 %v1509, %v1513
          %vm1515 = vweird.f32 %v1412
          %vm1516 = vweird.f32 %v1509
          %vm1517 = vmor %vm1515, %vm1516
          %v1518 = vsel %vm1517, %v1509, %v1514
          %v1519 = vrsqrt.pop %v1413
          %v1520 = vmul.f32 %v1519, %v1413
          %v1521 = vmul.f32 %v1520, %v1519
          %v1522 = vmul.f32 0.5, %v1521
          %v1523 = vsub.f32 1.5, %v1522
          %v1524 = vmul.f32 %v1519, %v1523
          %vm1525 = vweird.f32 %v1413
          %vm1526 = vweird.f32 %v1519
          %vm1527 = vmor %vm1525, %vm1526
          %v1528 = vsel %vm1527, %v1519, %v1524
          %v1529 = vrsqrt.pop %v1414
          %v1530 = vmul.f32 %v1529, %v1414
          %v1531 = vmul.f32 %v1530, %v1529
          %v1532 = vmul.f32 0.5, %v1531
          %v1533 = vsub.f32 1.5, %v1532
          %v1534 = vmul.f32 %v1529, %v1533
          %vm1535 = vweird.f32 %v1414
          %vm1536 = vweird.f32 %v1529
          %vm1537 = vmor %vm1535, %vm1536
          %v1538 = vsel %vm1537, %v1529, %v1534
          %v1539 = vrsqrt.pop %v1415
          %v1540 = vmul.f32 %v1539, %v1415
          %v1541 = vmul.f32 %v1540, %v1539
          %v1542 = vmul.f32 0.5, %v1541
          %v1543 = vsub.f32 1.5, %v1542
          %v1544 = vmul.f32 %v1539, %v1543
          %vm1545 = vweird.f32 %v1415
          %vm1546 = vweird.f32 %v1539
          %vm1547 = vmor %vm1545, %vm1546
          %v1548 = vsel %vm1547, %v1539, %v1544
          %v1549 = vrsqrt.pop %v1416
          %v1550 = vmul.f32 %v1549, %v1416
          %v1551 = vmul.f32 %v1550, %v1549
          %v1552 = vmul.f32 0.5, %v1551
          %v1553 = vsub.f32 1.5, %v1552
          %v1554 = vmul.f32 %v1549, %v1553
          %vm1555 = vweird.f32 %v1416
          %vm1556 = vweird.f32 %v1549
          %vm1557 = vmor %vm1555, %vm1556
          %v1558 = vsel %vm1557, %v1549, %v1554
          %v1559 = vrsqrt.pop %v1417
          %v1560 = vmul.f32 %v1559, %v1417
          %v1561 = vmul.f32 %v1560, %v1559
          %v1562 = vmul.f32 0.5, %v1561
          %v1563 = vsub.f32 1.5, %v1562
          %v1564 = vmul.f32 %v1559, %v1563
          %vm1565 = vweird.f32 %v1417
          %vm1566 = vweird.f32 %v1559
          %vm1567 = vmor %vm1565, %vm1566
          %v1568 = vsel %vm1567, %v1559, %v1564
          %v1569 = vrsqrt.pop %v1418
          %v1570 = vmul.f32 %v1569, %v1418
          %v1571 = vmul.f32 %v1570, %v1569
          %v1572 = vmul.f32 0.5, %v1571
          %v1573 = vsub.f32 1.5, %v1572
          %v1574 = vmul.f32 %v1569, %v1573
          %vm1575 = vweird.f32 %v1418
          %vm1576 = vweird.f32 %v1569
          %vm1577 = vmor %vm1575, %vm1576
          %v1578 = vsel %vm1577, %v1569, %v1574
          %1595 = vrot.lane.b32.xlu0 %v1428, 4
          %v1596 = vpop.permute.xlu0 %1595
          %1597 = vrot.lane.b32.xlu0 %v1438, 4
          %v1598 = vpop.permute.xlu0 %1597
          %1599 = vrot.lane.b32.xlu0 %v1448, 4
          %v1600 = vpop.permute.xlu0 %1599
          %1601 = vrot.lane.b32.xlu0 %v1458, 4
          %v1602 = vpop.permute.xlu0 %1601
          %1603 = vrot.lane.b32.xlu0 %v1468, 4
          %v1604 = vpop.permute.xlu0 %1603
          %1605 = vrot.lane.b32.xlu0 %v1478, 4
          %v1606 = vpop.permute.xlu0 %1605
          %1607 = vrot.lane.b32.xlu0 %v1488, 4
          %v1608 = vpop.permute.xlu0 %1607
          %1609 = vrot.lane.b32.xlu0 %v1498, 4
          %v1610 = vpop.permute.xlu0 %1609
          %1611 = vrot.lane.b32.xlu0 %v1508, 4
          %v1612 = vpop.permute.xlu0 %1611
          %1613 = vrot.lane.b32.xlu0 %v1518, 4
          %v1614 = vpop.permute.xlu0 %1613
          %1615 = vrot.lane.b32.xlu0 %v1528, 4
          %v1616 = vpop.permute.xlu0 %1615
          %1617 = vrot.lane.b32.xlu0 %v1538, 4
          %v1618 = vpop.permute.xlu0 %1617
          %1619 = vrot.lane.b32.xlu0 %v1548, 4
          %v1620 = vpop.permute.xlu0 %1619
          %1621 = vrot.lane.b32.xlu0 %v1558, 4
          %v1622 = vpop.permute.xlu0 %1621
          %1623 = vrot.lane.b32.xlu0 %v1568, 4
          %v1624 = vpop.permute.xlu0 %1623
          %1625 = vrot.lane.b32.xlu0 %v1578, 4
          %v1626 = vpop.permute.xlu0 %1625
          %v1643 = vmul.f32 %v891, %v1596
          %v1644 = vmul.f32 %v892, %v1598
          %v1645 = vmul.f32 %v893, %v1600
          %v1646 = vmul.f32 %v894, %v1602
          %v1647 = vmul.f32 %v895, %v1604
          %v1648 = vmul.f32 %v896, %v1606
          %v1649 = vmul.f32 %v897, %v1608
          %v1650 = vmul.f32 %v898, %v1610
          %v1651 = vmul.f32 %v899, %v1612
          %v1652 = vmul.f32 %v900, %v1614
          %v1653 = vmul.f32 %v901, %v1616
          %v1654 = vmul.f32 %v902, %v1618
          %v1655 = vmul.f32 %v903, %v1620
          %v1656 = vmul.f32 %v904, %v1622
          %v1657 = vmul.f32 %v905, %v1624
          %v1658 = vmul.f32 %v906, %v1626
          %v1659 = vsub.f32 0.0, %v1643
          %v1660 = vsub.f32 0.0, %v1644
          %v1661 = vsub.f32 0.0, %v1645
          %v1662 = vsub.f32 0.0, %v1646
          %v1663 = vsub.f32 0.0, %v1647
          %v1664 = vsub.f32 0.0, %v1648
          %v1665 = vsub.f32 0.0, %v1649
          %v1666 = vsub.f32 0.0, %v1650
          %v1667 = vsub.f32 0.0, %v1651
          %v1668 = vsub.f32 0.0, %v1652
          %v1669 = vsub.f32 0.0, %v1653
          %v1670 = vsub.f32 0.0, %v1654
          %v1671 = vsub.f32 0.0, %v1655
          %v1672 = vsub.f32 0.0, %v1656
          %v1673 = vsub.f32 0.0, %v1657
          %v1674 = vsub.f32 0.0, %v1658
          %1691 = vrot.lane.b32.xlu0 %v1659, 125
          %v1692 = vpop.permute.xlu0 %1691
          %1693 = vrot.lane.b32.xlu0 %v1660, 125
          %v1694 = vpop.permute.xlu0 %1693
          %1695 = vrot.lane.b32.xlu0 %v1661, 125
          %v1696 = vpop.permute.xlu0 %1695
          %1697 = vrot.lane.b32.xlu0 %v1662, 125
          %v1698 = vpop.permute.xlu0 %1697
          %1699 = vrot.lane.b32.xlu0 %v1663, 125
          %v1700 = vpop.permute.xlu0 %1699
          %1701 = vrot.lane.b32.xlu0 %v1664, 125
          %v1702 = vpop.permute.xlu0 %1701
          %1703 = vrot.lane.b32.xlu0 %v1665, 125
          %v1704 = vpop.permute.xlu0 %1703
          %1705 = vrot.lane.b32.xlu0 %v1666, 125
          %v1706 = vpop.permute.xlu0 %1705
          %1707 = vrot.lane.b32.xlu0 %v1667, 125
          %v1708 = vpop.permute.xlu0 %1707
          %1709 = vrot.lane.b32.xlu0 %v1668, 125
          %v1710 = vpop.permute.xlu0 %1709
          %1711 = vrot.lane.b32.xlu0 %v1669, 125
          %v1712 = vpop.permute.xlu0 %1711
          %1713 = vrot.lane.b32.xlu0 %v1670, 125
          %v1714 = vpop.permute.xlu0 %1713
          %1715 = vrot.lane.b32.xlu0 %v1671, 125
          %v1716 = vpop.permute.xlu0 %1715
          %1717 = vrot.lane.b32.xlu0 %v1672, 125
          %v1718 = vpop.permute.xlu0 %1717
          %1719 = vrot.lane.b32.xlu0 %v1673, 125
          %v1720 = vpop.permute.xlu0 %1719
          %1721 = vrot.lane.b32.xlu0 %v1674, 125
          %v1722 = vpop.permute.xlu0 %1721
          %1739 = vst.msk [vmem:[%s312] sm:$0xff] %vm579, %v1692
          %1740 = vst.msk [vmem:[%s312 + $0x8] sm:$0xff] %vm579, %v1694
          %1741 = vst.msk [vmem:[%s312 + $0x10] sm:$0xff] %vm579, %v1696
          %1742 = vst.msk [vmem:[%s312 + $0x18] sm:$0xff] %vm579, %v1698
          %1743 = vst.msk [vmem:[%s312 + $0x20] sm:$0xff] %vm579, %v1700
          %1744 = vst.msk [vmem:[%s312 + $0x28] sm:$0xff] %vm579, %v1702
          %1745 = vst.msk [vmem:[%s312 + $0x30] sm:$0xff] %vm579, %v1704
          %1746 = vst.msk [vmem:[%s312 + $0x38] sm:$0xff] %vm579, %v1706
          %1747 = vst.msk [vmem:[%s312 + $0x40] sm:$0xff] %vm579, %v1708
          %1748 = vst.msk [vmem:[%s312 + $0x48] sm:$0xff] %vm579, %v1710
          %1749 = vst.msk [vmem:[%s312 + $0x50] sm:$0xff] %vm579, %v1712
          %1750 = vst.msk [vmem:[%s312 + $0x58] sm:$0xff] %vm579, %v1714
          %1751 = vst.msk [vmem:[%s312 + $0x60] sm:$0xff] %vm579, %v1716
          %1752 = vst.msk [vmem:[%s312 + $0x68] sm:$0xff] %vm579, %v1718
          %1753 = vst.msk [vmem:[%s312 + $0x70] sm:$0xff] %vm579, %v1720
          %1754 = vst.msk [vmem:[%s312 + $0x78] sm:$0xff] %vm579, %v1722
        $region52: #{tpu_custom_call.1} parent=31 // pred_fallthru
          _
        %s1755 = sand.u32 %s124, 1
        %s1756 = sand.u32 %s124, 1
        %s1757 = smul.addr %s1756, 128
        %s1758 = scalar_lea.vmem [#allocation8], %s1757
        // Predicated region
        $region53: #{tpu_custom_call.1} parent=31 // pred_check
          %p1759 = pneg %p134
        $region54: #{tpu_custom_call.1} parent=31 // pred_check_branch
          %1761 = sbr.rel (%p1759) target = $region56
        $region55: #{tpu_custom_call.1} parent=31 // pred_region
          %s1762 = smul.u32 16, %s24
          %s1763 = ssub.s32 25, %s1762
          %p1764 = scmp.lt.s32.totalorder %s1763, 16
          %s1765 = scalar_select %p1764, %s1763, 16
          %s1766 = smul.u32 8, %s1765
          %p1767 = scmp.ne.s32.totalorder 0, %s1766
          %s1768 = smul.addr %s1762, 8
          %s1769 = scalar_lea.vmem %s3, %s1768
          // Predicated region
          $region57: #{tpu_custom_call.1} parent=55 // pred_check
            %p1770 = pneg %p1767
          $region58: #{tpu_custom_call.1} parent=55 // pred_check_branch
            %1772 = sbr.rel (%p1770) target = $region60
          $region59: #{tpu_custom_call.1} parent=55 // pred_region
            // Predicated region
            $region61: #{tpu_custom_call.1} parent=59 // pred_check
              _
            $region62: #{tpu_custom_call.1} parent=59 // pred_check_branch
              %1774 = sbr.rel (0) target = $region64
            $region63: #{tpu_custom_call.1} parent=59 // pred_region
              // Predicated region
              $region83: #{tpu_custom_call.1} parent=63 // pred_check
                _
              $region84: #{tpu_custom_call.1} parent=63 // pred_check_branch
                %1854 = sbr.rel (0) target = $region86
              $region85: #{tpu_custom_call.1} parent=63 // pred_region
                %s1855 = sshrl.u32 %s1765, 4
                // While loop
                $region87: #{tpu_custom_call.1} parent=85 // loop_pre_header
                  _
                $region88: #{tpu_custom_call.1} parent=85 // loop_header
                  %s1857 = sphi 0, %s1859
                  %p1858 = scmp.ge.s32.totalorder %s1857, %s1855
                  %s1862 = sphi 0, %s1899
                  %s1863 = sphi %s1758, %s1902
                  %s1864 = sphi %s1769, %s1903
                $region89: #{tpu_custom_call.1} parent=85 // loop_header_branch
                  %1861 = sbr.rel (%p1858) target = $region93
                $region90: #{tpu_custom_call.1} parent=85 // loop_body
                  %v1865 = vld [vmem:[%s1863] sm:$0xff]
                  %1866 = vst [vmem:[%s1864] sm:$0xff] %v1865
                  %v1867 = vld [vmem:[%s1863 + $0x8] sm:$0xff]
                  %1868 = vst [vmem:[%s1864 + $0x8] sm:$0xff] %v1867
                  %v1869 = vld [vmem:[%s1863 + $0x10] sm:$0xff]
                  %1870 = vst [vmem:[%s1864 + $0x10] sm:$0xff] %v1869
                  %v1871 = vld [vmem:[%s1863 + $0x18] sm:$0xff]
                  %1872 = vst [vmem:[%s1864 + $0x18] sm:$0xff] %v1871
                  %v1873 = vld [vmem:[%s1863 + $0x20] sm:$0xff]
                  %1874 = vst [vmem:[%s1864 + $0x20] sm:$0xff] %v1873
                  %v1875 = vld [vmem:[%s1863 + $0x28] sm:$0xff]
                  %1876 = vst [vmem:[%s1864 + $0x28] sm:$0xff] %v1875
                  %v1877 = vld [vmem:[%s1863 + $0x30] sm:$0xff]
                  %1878 = vst [vmem:[%s1864 + $0x30] sm:$0xff] %v1877
                  %v1879 = vld [vmem:[%s1863 + $0x38] sm:$0xff]
                  %1880 = vst [vmem:[%s1864 + $0x38] sm:$0xff] %v1879
                  %v1881 = vld [vmem:[%s1863 + $0x40] sm:$0xff]
                  %1882 = vst [vmem:[%s1864 + $0x40] sm:$0xff] %v1881
                  %v1883 = vld [vmem:[%s1863 + $0x48] sm:$0xff]
                  %1884 = vst [vmem:[%s1864 + $0x48] sm:$0xff] %v1883
                  %v1885 = vld [vmem:[%s1863 + $0x50] sm:$0xff]
                  %1886 = vst [vmem:[%s1864 + $0x50] sm:$0xff] %v1885
                  %v1887 = vld [vmem:[%s1863 + $0x58] sm:$0xff]
                  %1888 = vst [vmem:[%s1864 + $0x58] sm:$0xff] %v1887
                  %v1889 = vld [vmem:[%s1863 + $0x60] sm:$0xff]
                  %1890 = vst [vmem:[%s1864 + $0x60] sm:$0xff] %v1889
                  %v1891 = vld [vmem:[%s1863 + $0x68] sm:$0xff]
                  %1892 = vst [vmem:[%s1864 + $0x68] sm:$0xff] %v1891
                  %v1893 = vld [vmem:[%s1863 + $0x70] sm:$0xff]
                  %1894 = vst [vmem:[%s1864 + $0x70] sm:$0xff] %v1893
                  %v1895 = vld [vmem:[%s1863 + $0x78] sm:$0xff]
                  %1896 = vst [vmem:[%s1864 + $0x78] sm:$0xff] %v1895
                  %s1897 = sadd.s32 1, %s1862
                  %p1898 = scmp.ge.s32.totalorder %s1897, %s1855
                  %s1899 = scalar_select %p1898, 0, %s1897
                  %s1900 = smul.u32 %s1899, 128
                  %s1901 = smul.u32 %s1899, 128
                  %s1902 = scalar_lea.vmem %s1758, %s1900 [#allocation8]
                  %s1903 = scalar_lea.vmem %s1769, %s1901
                $region91: #{tpu_custom_call.1} parent=85 // loop_footer
                  %s1859 = sadd.s32 %s1857, 1
                $region92: #{tpu_custom_call.1} parent=85 // loop_footer_branch
                  %1856 = sbr.rel target = $region88
                $region93: #{tpu_custom_call.1} parent=85 // loop_exit
                  _
                %s1904 = sshrl.u32 %s1765, 4
                %s1905 = sand.u32 %s1765, 15
                %s1906 = smul.u32 %s1904, 16
                %s1907 = smul.u32 8, %s1906
                %s1908 = scalar_lea.vmem %s1758, %s1907 [#allocation8]
                %s1909 = smul.u32 8, %s1906
                %s1910 = scalar_lea.vmem %s1769, %s1909
                // While loop
                $region94: #{tpu_custom_call.1} parent=85 // loop_pre_header
                  _
                $region95: #{tpu_custom_call.1} parent=85 // loop_header
                  %s1912 = sphi 0, %s1914
                  %p1913 = scmp.ge.s32.totalorder %s1912, %s1905
                  %s1917 = sphi 0, %s1924
                  %s1918 = sphi %s1908, %s1927
                  %s1919 = sphi %s1910, %s1928
                $region96: #{tpu_custom_call.1} parent=85 // loop_header_branch
                  %1916 = sbr.rel (%p1913) target = $region100
                $region97: #{tpu_custom_call.1} parent=85 // loop_body
                  %v1920 = vld [vmem:[%s1918] sm:$0xff]
                  %1921 = vst [vmem:[%s1919] sm:$0xff] %v1920
                  %s1922 = sadd.s32 1, %s1917
                  %p1923 = scmp.ge.s32.totalorder %s1922, %s1905
                  %s1924 = scalar_select %p1923, 0, %s1922
                  %s1925 = smul.u32 %s1924, 8
                  %s1926 = smul.u32 %s1924, 8
                  %s1927 = scalar_lea.vmem %s1908, %s1925 [#allocation8]
                  %s1928 = scalar_lea.vmem %s1910, %s1926
                $region98: #{tpu_custom_call.1} parent=85 // loop_footer
                  %s1914 = sadd.s32 %s1912, 1
                $region99: #{tpu_custom_call.1} parent=85 // loop_footer_branch
                  %1911 = sbr.rel target = $region95
                $region100: #{tpu_custom_call.1} parent=85 // loop_exit
                  _
              $region86: #{tpu_custom_call.1} parent=63 // pred_fallthru
                _
              // Predicated region
              $region101: #{tpu_custom_call.1} parent=63 // pred_check
                _
              $region102: #{tpu_custom_call.1} parent=63 // pred_check_branch
                %1930 = sbr.rel target = $region104
              $region103: #{tpu_custom_call.1} parent=63 // pred_region
                _
              $region104: #{tpu_custom_call.1} parent=63 // pred_fallthru
                _
            $region64: #{tpu_custom_call.1} parent=59 // pred_fallthru
              _
            // Predicated region
            $region65: #{tpu_custom_call.1} parent=59 // pred_check
              _
            $region66: #{tpu_custom_call.1} parent=59 // pred_check_branch
              %1776 = sbr.rel target = $region68
            $region67: #{tpu_custom_call.1} parent=59 // pred_region
              %s1778 = ssub.s32 256, 1
              %s1779 = sshrl.u32 %s1765, 4
              // While loop
              $region69: #{tpu_custom_call.1} parent=67 // loop_pre_header
                _
              $region70: #{tpu_custom_call.1} parent=67 // loop_header
                %s1781 = sphi 0, %s1783
                %p1782 = scmp.ge.s32.totalorder %s1781, %s1779
                %s1786 = sphi 0, %s1823
                %s1787 = sphi %s1758, %s1826
                %s1788 = sphi %s1769, %s1827
              $region71: #{tpu_custom_call.1} parent=67 // loop_header_branch
                %1785 = sbr.rel (%p1782) target = $region75
              $region72: #{tpu_custom_call.1} parent=67 // loop_body
                %v1789 = vld [vmem:[%s1787] sm:%s1778]
                %1790 = vst [vmem:[%s1788] sm:%s1778] %v1789
                %v1791 = vld [vmem:[%s1787 + $0x8] sm:%s1778]
                %1792 = vst [vmem:[%s1788 + $0x8] sm:%s1778] %v1791
                %v1793 = vld [vmem:[%s1787 + $0x10] sm:%s1778]
                %1794 = vst [vmem:[%s1788 + $0x10] sm:%s1778] %v1793
                %v1795 = vld [vmem:[%s1787 + $0x18] sm:%s1778]
                %1796 = vst [vmem:[%s1788 + $0x18] sm:%s1778] %v1795
                %v1797 = vld [vmem:[%s1787 + $0x20] sm:%s1778]
                %1798 = vst [vmem:[%s1788 + $0x20] sm:%s1778] %v1797
                %v1799 = vld [vmem:[%s1787 + $0x28] sm:%s1778]
                %1800 = vst [vmem:[%s1788 + $0x28] sm:%s1778] %v1799
                %v1801 = vld [vmem:[%s1787 + $0x30] sm:%s1778]
                %1802 = vst [vmem:[%s1788 + $0x30] sm:%s1778] %v1801
                %v1803 = vld [vmem:[%s1787 + $0x38] sm:%s1778]
                %1804 = vst [vmem:[%s1788 + $0x38] sm:%s1778] %v1803
                %v1805 = vld [vmem:[%s1787 + $0x40] sm:%s1778]
                %1806 = vst [vmem:[%s1788 + $0x40] sm:%s1778] %v1805
                %v1807 = vld [vmem:[%s1787 + $0x48] sm:%s1778]
                %1808 = vst [vmem:[%s1788 + $0x48] sm:%s1778] %v1807
                %v1809 = vld [vmem:[%s1787 + $0x50] sm:%s1778]
                %1810 = vst [vmem:[%s1788 + $0x50] sm:%s1778] %v1809
                %v1811 = vld [vmem:[%s1787 + $0x58] sm:%s1778]
                %1812 = vst [vmem:[%s1788 + $0x58] sm:%s1778] %v1811
                %v1813 = vld [vmem:[%s1787 + $0x60] sm:%s1778]
                %1814 = vst [vmem:[%s1788 + $0x60] sm:%s1778] %v1813
                %v1815 = vld [vmem:[%s1787 + $0x68] sm:%s1778]
                %1816 = vst [vmem:[%s1788 + $0x68] sm:%s1778] %v1815
                %v1817 = vld [vmem:[%s1787 + $0x70] sm:%s1778]
                %1818 = vst [vmem:[%s1788 + $0x70] sm:%s1778] %v1817
                %v1819 = vld [vmem:[%s1787 + $0x78] sm:%s1778]
                %1820 = vst [vmem:[%s1788 + $0x78] sm:%s1778] %v1819
                %s1821 = sadd.s32 1, %s1786
                %p1822 = scmp.ge.s32.totalorder %s1821, %s1779
                %s1823 = scalar_select %p1822, 0, %s1821
                %s1824 = smul.u32 %s1823, 128
                %s1825 = smul.u32 %s1823, 128
                %s1826 = scalar_lea.vmem %s1758, %s1824 [#allocation8]
                %s1827 = scalar_lea.vmem %s1769, %s1825
              $region73: #{tpu_custom_call.1} parent=67 // loop_footer
                %s1783 = sadd.s32 %s1781, 1
              $region74: #{tpu_custom_call.1} parent=67 // loop_footer_branch
                %1780 = sbr.rel target = $region70
              $region75: #{tpu_custom_call.1} parent=67 // loop_exit
                _
              %s1828 = sshrl.u32 %s1765, 4
              %s1829 = sand.u32 %s1765, 15
              %s1830 = smul.u32 %s1828, 16
              %s1831 = smul.u32 8, %s1830
              %s1832 = scalar_lea.vmem %s1758, %s1831 [#allocation8]
              %s1833 = smul.u32 8, %s1830
              %s1834 = scalar_lea.vmem %s1769, %s1833
              // While loop
              $region76: #{tpu_custom_call.1} parent=67 // loop_pre_header
                _
              $region77: #{tpu_custom_call.1} parent=67 // loop_header
                %s1836 = sphi 0, %s1838
                %p1837 = scmp.ge.s32.totalorder %s1836, %s1829
                %s1841 = sphi 0, %s1848
                %s1842 = sphi %s1832, %s1851
                %s1843 = sphi %s1834, %s1852
              $region78: #{tpu_custom_call.1} parent=67 // loop_header_branch
                %1840 = sbr.rel (%p1837) target = $region82
              $region79: #{tpu_custom_call.1} parent=67 // loop_body
                %v1844 = vld [vmem:[%s1842] sm:%s1778]
                %1845 = vst [vmem:[%s1843] sm:%s1778] %v1844
                %s1846 = sadd.s32 1, %s1841
                %p1847 = scmp.ge.s32.totalorder %s1846, %s1829
                %s1848 = scalar_select %p1847, 0, %s1846
                %s1849 = smul.u32 %s1848, 8
                %s1850 = smul.u32 %s1848, 8
                %s1851 = scalar_lea.vmem %s1832, %s1849 [#allocation8]
                %s1852 = scalar_lea.vmem %s1834, %s1850
              $region80: #{tpu_custom_call.1} parent=67 // loop_footer
                %s1838 = sadd.s32 %s1836, 1
              $region81: #{tpu_custom_call.1} parent=67 // loop_footer_branch
                %1835 = sbr.rel target = $region77
              $region82: #{tpu_custom_call.1} parent=67 // loop_exit
                _
            $region68: #{tpu_custom_call.1} parent=59 // pred_fallthru
              _
          $region60: #{tpu_custom_call.1} parent=55 // pred_fallthru
            _
          %1931 = vnop
        $region56: #{tpu_custom_call.1} parent=31 // pred_fallthru
          _
      $region32: #{tpu_custom_call.1} parent=5 // pred_fallthru
        _
      %p1932 = scmp.le.s32.totalorder 2, %s15
      // Predicated region
      $region105: #{tpu_custom_call.1} parent=5 // pred_check
        %p1933 = pneg %p1932
      $region106: #{tpu_custom_call.1} parent=5 // pred_check_branch
        %1935 = sbr.rel (%p1933) target = $region108
      $region107: #{tpu_custom_call.1} parent=5 // pred_region
        %s1936 = ssub.s32 %s15, 2
        // Predicated region
        $region109: #{tpu_custom_call.1} parent=107 // pred_check
          %p1937 = pneg %p140
        $region110: #{tpu_custom_call.1} parent=107 // pred_check_branch
          %1939 = sbr.rel (%p1937) target = $region112
        $region111: #{tpu_custom_call.1} parent=107 // pred_region
          %s1940 = sand.u32 %s125, 1
          %s1941 = sand.u32 %s125, 1
          %s1942 = smul.addr %s1941, 128
          %s1943 = scalar_lea.vmem [#allocation8], %s1942
        $region112: #{tpu_custom_call.1} parent=107 // pred_fallthru
          _
      $region108: #{tpu_custom_call.1} parent=5 // pred_fallthru
        _
    $region6: #{tpu_custom_call.1} parent=1 // loop_footer
      %s19 = sadd.s32 1, %s15
    $region7: #{tpu_custom_call.1} parent=1 // loop_footer_branch
      %14 = sbr.rel target = $region3
    $region8: #{tpu_custom_call.1} parent=1 // loop_exit
      _
    %1944 = vsyncpa [#allocation4], 1
    %s1945 = scalar_lea.sflag [#allocation4], 1
    %1946 = vsyncpa %s1945, 1
    %1947 = vsyncpa [#allocation6], 1
    %s1948 = scalar_lea.sflag [#allocation6], 1
    %1949 = vsyncpa %s1948, 1

</llo_original>
